<compile_context>
chip_gen: v7x
topology: tpu7x:2x2x1
jax: 0.10.0
libtpu: 0.0.40
codegen_flags: <defaults>
</compile_context>

<pallas_src>
import jax
import jax.numpy as jnp
from jax.experimental import pallas as pl
from jax.experimental.pallas import tpu as pltpu


def _lstm_classifier_kernel(x_ref, wih_ref, whh_ref, b_ref,
                            w1_ref, b1_ref, w2_ref, b2_ref,
                            out_ref, pre_scr):
    """Single-invocation kernel (no grid). Everything is VMEM-resident.

    x_ref  : (T*B, D)   time-major flattened input (bf16)
    wih_ref: (D, 4H)    input->gates weights, g-columns pre-scaled by 2 (bf16)
    whh_ref: (H, 4H)    hidden->gates weights, g-columns pre-scaled by 2 (f32)
    b_ref  : (1, 4H)    b_ih + b_hh, g-columns pre-scaled by 2 (f32)
    w1_ref : (H, HID)   hidden2out[0] weight (pre-transposed)
    b1_ref : (1, HID)
    w2_ref : (HID, CP)  hidden2out[2] weight, zero-padded to CP=128 columns
    b2_ref : (1, CP)
    out_ref: (B, CP)    lane-dense padded logits
    pre_scr: (T*B, 4H)  hoisted input projection (X @ W_ih + bias), f32
    """
    TB = x_ref.shape[0]
    B = out_ref.shape[0]
    T = TB // B
    H = whh_ref.shape[0]

    # Hoisted input projection for ALL timesteps: one well-shaped bf16 matmul
    # with f32 accumulation, bias folded in once (off the serial recurrence).
    pre_scr[...] = (
        jnp.dot(x_ref[...], wih_ref[...], preferred_element_type=jnp.float32)
        + b_ref[...])

    # Keep W_hh register-resident only while it is small (H=32 -> 4 vregs).
    # For larger H, read it from VMEM inside the dot and let Mosaic manage tiles.
    # TODO(synk): for these tiny per-step dots, pltpu.matmul_push_rhs/acc_lhs/pop
    #             would avoid re-pushing the RHS each step; kept to jnp.dot for
    #             portability across v5e/v6e/v7x.
    if 4 * H * H * 4 <= 64 * 1024:
        whh = whh_ref[...]
        dot_h = lambda h: jnp.dot(h, whh, preferred_element_type=jnp.float32)
    else:
        dot_h = lambda h: jnp.dot(h, whh_ref[...],
                                  preferred_element_type=jnp.float32)

    def step(t, carry):
        h, c = carry                                # (B, H) each, in vregs
        row = pl.multiple_of(t * B, B)              # sublane-aligned offset
        gates = pre_scr[pl.ds(row, B), :] + dot_h(h)   # (B, 4H), f32

        # Single full-vreg EUP pass.  g-gate pre-activations were pre-scaled by
        # 2 in the wrapper, so tanh(z) = 2*sigmoid(2z) - 1 is a cheap VPU fma.
        sg = jax.nn.sigmoid(gates)
        i_g = sg[:, 0 * H:1 * H]
        f_g = sg[:, 1 * H:2 * H]
        g_g = 2.0 * sg[:, 2 * H:3 * H] - 1.0
        o_g = sg[:, 3 * H:4 * H]

        c_new = f_g * c + i_g * g_g
        h_new = o_g * jnp.tanh(c_new)               # quarter-vreg EUP op
        return h_new, c_new

    h0 = jnp.zeros((B, H), jnp.float32)
    c0 = jnp.zeros((B, H), jnp.float32)
    unroll = True if T <= 32 else 8                 # avoid I-cache blowup at big T
    h_final, _ = jax.lax.fori_loop(0, T, step, (h0, c0), unroll=unroll)

    # hidden2out MLP on the final hidden state (lane-dense padded logits).
    z = jnp.dot(h_final, w1_ref[...], preferred_element_type=jnp.float32) + b1_ref[...]
    z = jnp.maximum(z, 0.0)                         # ReLU
    logits = jnp.dot(z, w2_ref[...], preferred_element_type=jnp.float32) + b2_ref[...]
    out_ref[...] = logits.astype(out_ref.dtype)


def lstm_classifier_forward(x_btd, params):
    """x_btd: (B, T, D) float32, PyTorch batch_first layout. Returns (B, C)."""
    B, T, D = x_btd.shape
    H = params["whh"].shape[0]
    HID = params["w1"].shape[1]
    C = params["w2"].shape[1]
    CP = max(128, ((C + 127) // 128) * 128)          # lane-dense output width
    BP = ((B + 7) // 8) * 8                          # sublane-aligned batch

    # Pre-scale the g-gate columns by 2 so the kernel needs only ONE sigmoid
    # pass per step (tanh(z) = 2*sigmoid(2z) - 1).  The scale is a power of 2,
    # so it is exact even after the bf16 cast of wih.
    gate_scale = jnp.ones((4 * H,), jnp.float32).at[2 * H:3 * H].set(2.0)
    wih_s = (params["wih"].astype(jnp.float32) * gate_scale).astype(jnp.bfloat16)
    whh_s = (params["whh"].astype(jnp.float32) * gate_scale)
    bias = ((params["b_ih"] + params["b_hh"]).astype(jnp.float32)
            * gate_scale).reshape(1, 4 * H)

    # Time-major, batch padded to a sublane multiple, flattened so the input
    # projection is a single matmul; bf16 for the off-recurrence matmul.
    x_tbd = jnp.transpose(x_btd, (1, 0, 2)).astype(jnp.float32)
    x_tbd = jnp.pad(x_tbd, ((0, 0), (0, BP - B), (0, 0)))
    x_flat = x_tbd.reshape(T * BP, D).astype(jnp.bfloat16)

    # Zero-pad the final linear layer to 128 output columns (lane-dense store).
    w2_pad = jnp.zeros((HID, CP), jnp.float32).at[:, :C].set(params["w2"])
    b2_pad = jnp.zeros((1, CP), jnp.float32).at[0, :C].set(params["b2"])

    # Explicit VMEM budget: pre_scr dominates at large T.  Headroom x2, capped
    # below v7x's 64 MiB physical ceiling (also safe for v5e's scoped default).
    pre_bytes = T * BP * 4 * H * 4
    operand_bytes = (x_flat.size * 2 + wih_s.size * 2
                     + (whh_s.size + bias.size + params["w1"].size + HID
                        + w2_pad.size + b2_pad.size + BP * CP) * 4)
    vmem_limit = int(min(64 * 1024 * 1024,
                         max(8 * 1024 * 1024, 2 * (pre_bytes + operand_bytes))))

    out_pad = pl.pallas_call(
        _lstm_classifier_kernel,
        out_shape=jax.ShapeDtypeStruct((BP, CP), jnp.float32),
        scratch_shapes=[pltpu.VMEM((T * BP, 4 * H), jnp.float32)],
        compiler_params=pltpu.CompilerParams(vmem_limit_bytes=vmem_limit),
    )(x_flat, wih_s, whh_s, bias,
      params["w1"], params["b1"].reshape(1, HID), w2_pad, b2_pad)

    return out_pad[:B, :C]


def make_params(key, D, H, HID, C):
    """Deterministic synthetic parameters (shapes match nn.LSTM + hidden2out)."""
    ks = jax.random.split(key, 8)
    s = 0.1
    return {
        # nn.LSTM: weight_ih (4H, D), weight_hh (4H, H) -> stored transposed
        "wih": jax.random.normal(ks[0], (D, 4 * H), jnp.float32) * s,
        "whh": jax.random.normal(ks[1], (H, 4 * H), jnp.float32) * s,
        "b_ih": jax.random.normal(ks[2], (4 * H,), jnp.float32) * s,
        "b_hh": jax.random.normal(ks[3], (4 * H,), jnp.float32) * s,
        # hidden2out: Linear(H, HID), Linear(HID, C) -> stored transposed
        "w1": jax.random.normal(ks[4], (H, HID), jnp.float32) * s,
        "b1": jax.random.normal(ks[5], (HID,), jnp.float32) * s,
        "w2": jax.random.normal(ks[6], (HID, C), jnp.float32) * s,
        "b2": jax.random.normal(ks[7], (C,), jnp.float32) * s,
    }


def reference_forward(x_btd, params):
    """Pure-JAX reference matching PyTorch LSTM (gate order i, f, g, o)."""
    B, T, D = x_btd.shape
    H = params["whh"].shape[0]
    b = params["b_ih"] + params["b_hh"]
    h = jnp.zeros((B, H), jnp.float32)
    c = jnp.zeros((B, H), jnp.float32)

    def step(carry, x_t):
        h, c = carry
        gates = x_t @ params["wih"] + h @ params["whh"] + b
        i = jax.nn.sigmoid(gates[:, 0 * H:1 * H])
        f = jax.nn.sigmoid(gates[:, 1 * H:2 * H])
        g = jnp.tanh(gates[:, 2 * H:3 * H])
        o = jax.nn.sigmoid(gates[:, 3 * H:4 * H])
        c = f * c + i * g
        h = o * jnp.tanh(c)
        return (h, c), None

    (h, c), _ = jax.lax.scan(step, (h, c), jnp.transpose(x_btd, (1, 0, 2)))
    z = jnp.maximum(h @ params["w1"] + params["b1"], 0.0)
    return z @ params["w2"] + params["b2"]


if __name__ == "__main__":
    B, T, D = 8, 8, 16          # batch, seq_len, data_size
    H, HID, C = 32, 128, 8      # hidden_size, hidden_dim, output_size

    key = jax.random.PRNGKey(0)
    k_x, k_p = jax.random.split(key)
    x = jax.random.normal(k_x, (B, T, D), jnp.float32)
    params = make_params(k_p, D, H, HID, C)

    out = lstm_classifier_forward(x, params)
    out = jax.block_until_ready(out)

    ref = reference_forward(x, params)
    assert out.shape == (B, C), out.shape
    # Tolerance covers f32 (vs PyTorch f64), the bf16 hoisted projection, and
    # the 2*sigmoid(2x)-1 rewrite of the gate tanh.
    assert jnp.allclose(out, ref, atol=5e-3, rtol=5e-3), (
        f"max abs diff {jnp.max(jnp.abs(out - ref))}")

    print("KERNEL_OK")
</pallas_src>

<mosaic_0001>
module attributes {stable_mosaic.version = 11 : i64} {
  func.func @_lstm_classifier_kernel(%arg0: memref<64x16xbf16, #tpu.memory_space<vmem>>, %arg1: memref<16x128xbf16, #tpu.memory_space<vmem>>, %arg2: memref<32x128xf32, #tpu.memory_space<vmem>>, %arg3: memref<1x128xf32, #tpu.memory_space<vmem>>, %arg4: memref<32x128xf32, #tpu.memory_space<vmem>>, %arg5: memref<1x128xf32, #tpu.memory_space<vmem>>, %arg6: memref<128x128xf32, #tpu.memory_space<vmem>>, %arg7: memref<1x128xf32, #tpu.memory_space<vmem>>, %arg8: memref<8x128xf32, #tpu.memory_space<vmem>>, %arg9: memref<64x128xf32, #tpu.memory_space<vmem>>) attributes {dimension_semantics = [], scalar_prefetch = 0 : i64, scratch_operands = 1 : i64, tpu.core_type = #tpu.core_type<tc>} {
    %c0 = arith.constant 0 : index
    %c0_0 = arith.constant 0 : index
    %0 = vector.load %arg0[%c0, %c0_0] : memref<64x16xbf16, #tpu.memory_space<vmem>>, vector<64x16xbf16>
    %c0_1 = arith.constant 0 : index
    %c0_2 = arith.constant 0 : index
    %1 = vector.load %arg1[%c0_1, %c0_2] : memref<16x128xbf16, #tpu.memory_space<vmem>>, vector<16x128xbf16>
    %cst = arith.constant dense<0.000000e+00> : vector<64x128xf32>
    %2 = tpu.matmul %0, %1, %cst {dimension_numbers = #tpu.dot_dimension_numbers<[1], [0], [0], [1], [0, 0, 1, 1], [], []>} : vector<64x16xbf16>, vector<16x128xbf16>, vector<64x128xf32> -> vector<64x128xf32>
    %c0_3 = arith.constant 0 : index
    %c0_4 = arith.constant 0 : index
    %3 = vector.load %arg3[%c0_3, %c0_4] : memref<1x128xf32, #tpu.memory_space<vmem>>, vector<1x128xf32>
    %4 = vector.broadcast %3 : vector<1x128xf32> to vector<64x128xf32>
    %5 = arith.addf %2, %4 : vector<64x128xf32>
    %c0_5 = arith.constant 0 : index
    %c0_6 = arith.constant 0 : index
    %6 = vector.load %arg9[%c0_5, %c0_6] : memref<64x128xf32, #tpu.memory_space<vmem>>, vector<64x128xf32>
    tpu.vector_store %arg9[%c0_5, %c0_6], %5 {strides = array<i32>} : memref<64x128xf32, #tpu.memory_space<vmem>>, vector<64x128xf32>,
    %c0_7 = arith.constant 0 : index
    %c0_8 = arith.constant 0 : index
    %7 = vector.load %arg2[%c0_7, %c0_8] : memref<32x128xf32, #tpu.memory_space<vmem>>, vector<32x128xf32>
    %cst_9 = arith.constant 0.000000e+00 : f32
    %8 = vector.broadcast %cst_9 : f32 to vector<8x32xf32>
    %cst_10 = arith.constant 0.000000e+00 : f32
    %9 = vector.broadcast %cst_10 : f32 to vector<8x32xf32>
    %c0_i32 = arith.constant 0 : i32
    %c8_i32 = arith.constant 8 : i32
    %10 = arith.muli %c0_i32, %c8_i32 : i32
    %11 = tpu.assume_multiple %10, 8 : i32
    %12 = arith.index_cast %11 : i32 to index
    %c0_11 = arith.constant 0 : index
    %13 = vector.load %arg9[%12, %c0_11] : memref<64x128xf32, #tpu.memory_space<vmem>>, vector<8x128xf32>
    %cst_12 = arith.constant dense<0.000000e+00> : vector<8x128xf32>
    %14 = tpu.matmul %8, %7, %cst_12 {dimension_numbers = #tpu.dot_dimension_numbers<[1], [0], [0], [1], [0, 0, 1, 1], [], []>} : vector<8x32xf32>, vector<32x128xf32>, vector<8x128xf32> -> vector<8x128xf32>
    %15 = arith.addf %13, %14 : vector<8x128xf32>
    %16 = arith.negf %15 : vector<8x128xf32>
    %17 = math.exp %16 : vector<8x128xf32>
    %cst_13 = arith.constant 1.000000e+00 : f32
    %18 = vector.broadcast %cst_13 : f32 to vector<8x128xf32>
    %19 = arith.addf %18, %17 : vector<8x128xf32>
    %20 = arith.divf %18, %19 : vector<8x128xf32>
    %21 = vector.extract_strided_slice %20 {offsets = [0, 0], sizes = [8, 32], strides = [1, 1]} : vector<8x128xf32> to vector<8x32xf32>
    %22 = vector.extract_strided_slice %20 {offsets = [0, 32], sizes = [8, 32], strides = [1, 1]} : vector<8x128xf32> to vector<8x32xf32>
    %23 = vector.extract_strided_slice %20 {offsets = [0, 64], sizes = [8, 32], strides = [1, 1]} : vector<8x128xf32> to vector<8x32xf32>
    %cst_14 = arith.constant 2.000000e+00 : f32
    %24 = vector.broadcast %cst_14 : f32 to vector<8x32xf32>
    %25 = arith.mulf %24, %23 : vector<8x32xf32>
    %cst_15 = arith.constant 1.000000e+00 : f32
    %26 = vector.broadcast %cst_15 : f32 to vector<8x32xf32>
    %27 = arith.subf %25, %26 : vector<8x32xf32>
    %28 = vector.extract_strided_slice %20 {offsets = [0, 96], sizes = [8, 32], strides = [1, 1]} : vector<8x128xf32> to vector<8x32xf32>
    %29 = arith.mulf %22, %9 : vector<8x32xf32>
    %30 = arith.mulf %21, %27 : vector<8x32xf32>
    %31 = arith.addf %29, %30 : vector<8x32xf32>
    %32 = math.tanh %31 : vector<8x32xf32>
    %33 = arith.mulf %28, %32 : vector<8x32xf32>
    %c1_i32 = arith.constant 1 : i32
    %c8_i32_16 = arith.constant 8 : i32
    %34 = arith.muli %c1_i32, %c8_i32_16 : i32
    %35 = tpu.assume_multiple %34, 8 : i32
    %36 = arith.index_cast %35 : i32 to index
    %c0_17 = arith.constant 0 : index
    %37 = vector.load %arg9[%36, %c0_17] : memref<64x128xf32, #tpu.memory_space<vmem>>, vector<8x128xf32>
    %cst_18 = arith.constant dense<0.000000e+00> : vector<8x128xf32>
    %38 = tpu.matmul %33, %7, %cst_18 {dimension_numbers = #tpu.dot_dimension_numbers<[1], [0], [0], [1], [0, 0, 1, 1], [], []>} : vector<8x32xf32>, vector<32x128xf32>, vector<8x128xf32> -> vector<8x128xf32>
    %39 = arith.addf %37, %38 : vector<8x128xf32>
    %40 = arith.negf %39 : vector<8x128xf32>
    %41 = math.exp %40 : vector<8x128xf32>
    %cst_19 = arith.constant 1.000000e+00 : f32
    %42 = vector.broadcast %cst_19 : f32 to vector<8x128xf32>
    %43 = arith.addf %42, %41 : vector<8x128xf32>
    %44 = arith.divf %42, %43 : vector<8x128xf32>
    %45 = vector.extract_strided_slice %44 {offsets = [0, 0], sizes = [8, 32], strides = [1, 1]} : vector<8x128xf32> to vector<8x32xf32>
    %46 = vector.extract_strided_slice %44 {offsets = [0, 32], sizes = [8, 32], strides = [1, 1]} : vector<8x128xf32> to vector<8x32xf32>
    %47 = vector.extract_strided_slice %44 {offsets = [0, 64], sizes = [8, 32], strides = [1, 1]} : vector<8x128xf32> to vector<8x32xf32>
    %cst_20 = arith.constant 2.000000e+00 : f32
    %48 = vector.broadcast %cst_20 : f32 to vector<8x32xf32>
    %49 = arith.mulf %48, %47 : vector<8x32xf32>
    %cst_21 = arith.constant 1.000000e+00 : f32
    %50 = vector.broadcast %cst_21 : f32 to vector<8x32xf32>
    %51 = arith.subf %49, %50 : vector<8x32xf32>
    %52 = vector.extract_strided_slice %44 {offsets = [0, 96], sizes = [8, 32], strides = [1, 1]} : vector<8x128xf32> to vector<8x32xf32>
    %53 = arith.mulf %46, %31 : vector<8x32xf32>
    %54 = arith.mulf %45, %51 : vector<8x32xf32>
    %55 = arith.addf %53, %54 : vector<8x32xf32>
    %56 = math.tanh %55 : vector<8x32xf32>
    %57 = arith.mulf %52, %56 : vector<8x32xf32>
    %c2_i32 = arith.constant 2 : i32
    %c8_i32_22 = arith.constant 8 : i32
    %58 = arith.muli %c2_i32, %c8_i32_22 : i32
    %59 = tpu.assume_multiple %58, 8 : i32
    %60 = arith.index_cast %59 : i32 to index
    %c0_23 = arith.constant 0 : index
    %61 = vector.load %arg9[%60, %c0_23] : memref<64x128xf32, #tpu.memory_space<vmem>>, vector<8x128xf32>
    %cst_24 = arith.constant dense<0.000000e+00> : vector<8x128xf32>
    %62 = tpu.matmul %57, %7, %cst_24 {dimension_numbers = #tpu.dot_dimension_numbers<[1], [0], [0], [1], [0, 0, 1, 1], [], []>} : vector<8x32xf32>, vector<32x128xf32>, vector<8x128xf32> -> vector<8x128xf32>
    %63 = arith.addf %61, %62 : vector<8x128xf32>
    %64 = arith.negf %63 : vector<8x128xf32>
    %65 = math.exp %64 : vector<8x128xf32>
    %cst_25 = arith.constant 1.000000e+00 : f32
    %66 = vector.broadcast %cst_25 : f32 to vector<8x128xf32>
    %67 = arith.addf %66, %65 : vector<8x128xf32>
    %68 = arith.divf %66, %67 : vector<8x128xf32>
    %69 = vector.extract_strided_slice %68 {offsets = [0, 0], sizes = [8, 32], strides = [1, 1]} : vector<8x128xf32> to vector<8x32xf32>
    %70 = vector.extract_strided_slice %68 {offsets = [0, 32], sizes = [8, 32], strides = [1, 1]} : vector<8x128xf32> to vector<8x32xf32>
    %71 = vector.extract_strided_slice %68 {offsets = [0, 64], sizes = [8, 32], strides = [1, 1]} : vector<8x128xf32> to vector<8x32xf32>
    %cst_26 = arith.constant 2.000000e+00 : f32
    %72 = vector.broadcast %cst_26 : f32 to vector<8x32xf32>
    %73 = arith.mulf %72, %71 : vector<8x32xf32>
    %cst_27 = arith.constant 1.000000e+00 : f32
    %74 = vector.broadcast %cst_27 : f32 to vector<8x32xf32>
    %75 = arith.subf %73, %74 : vector<8x32xf32>
    %76 = vector.extract_strided_slice %68 {offsets = [0, 96], sizes = [8, 32], strides = [1, 1]} : vector<8x128xf32> to vector<8x32xf32>
    %77 = arith.mulf %70, %55 : vector<8x32xf32>
    %78 = arith.mulf %69, %75 : vector<8x32xf32>
    %79 = arith.addf %77, %78 : vector<8x32xf32>
    %80 = math.tanh %79 : vector<8x32xf32>
    %81 = arith.mulf %76, %80 : vector<8x32xf32>
    %c3_i32 = arith.constant 3 : i32
    %c8_i32_28 = arith.constant 8 : i32
    %82 = arith.muli %c3_i32, %c8_i32_28 : i32
    %83 = tpu.assume_multiple %82, 8 : i32
    %84 = arith.index_cast %83 : i32 to index
    %c0_29 = arith.constant 0 : index
    %85 = vector.load %arg9[%84, %c0_29] : memref<64x128xf32, #tpu.memory_space<vmem>>, vector<8x128xf32>
    %cst_30 = arith.constant dense<0.000000e+00> : vector<8x128xf32>
    %86 = tpu.matmul %81, %7, %cst_30 {dimension_numbers = #tpu.dot_dimension_numbers<[1], [0], [0], [1], [0, 0, 1, 1], [], []>} : vector<8x32xf32>, vector<32x128xf32>, vector<8x128xf32> -> vector<8x128xf32>
    %87 = arith.addf %85, %86 : vector<8x128xf32>
    %88 = arith.negf %87 : vector<8x128xf32>
    %89 = math.exp %88 : vector<8x128xf32>
    %cst_31 = arith.constant 1.000000e+00 : f32
    %90 = vector.broadcast %cst_31 : f32 to vector<8x128xf32>
    %91 = arith.addf %90, %89 : vector<8x128xf32>
    %92 = arith.divf %90, %91 : vector<8x128xf32>
    %93 = vector.extract_strided_slice %92 {offsets = [0, 0], sizes = [8, 32], strides = [1, 1]} : vector<8x128xf32> to vector<8x32xf32>
    %94 = vector.extract_strided_slice %92 {offsets = [0, 32], sizes = [8, 32], strides = [1, 1]} : vector<8x128xf32> to vector<8x32xf32>
    %95 = vector.extract_strided_slice %92 {offsets = [0, 64], sizes = [8, 32], strides = [1, 1]} : vector<8x128xf32> to vector<8x32xf32>
    %cst_32 = arith.constant 2.000000e+00 : f32
    %96 = vector.broadcast %cst_32 : f32 to vector<8x32xf32>
    %97 = arith.mulf %96, %95 : vector<8x32xf32>
    %cst_33 = arith.constant 1.000000e+00 : f32
    %98 = vector.broadcast %cst_33 : f32 to vector<8x32xf32>
    %99 = arith.subf %97, %98 : vector<8x32xf32>
    %100 = vector.extract_strided_slice %92 {offsets = [0, 96], sizes = [8, 32], strides = [1, 1]} : vector<8x128xf32> to vector<8x32xf32>
    %101 = arith.mulf %94, %79 : vector<8x32xf32>
    %102 = arith.mulf %93, %99 : vector<8x32xf32>
    %103 = arith.addf %101, %102 : vector<8x32xf32>
    %104 = math.tanh %103 : vector<8x32xf32>
    %105 = arith.mulf %100, %104 : vector<8x32xf32>
    %c4_i32 = arith.constant 4 : i32
    %c8_i32_34 = arith.constant 8 : i32
    %106 = arith.muli %c4_i32, %c8_i32_34 : i32
    %107 = tpu.assume_multiple %106, 8 : i32
    %108 = arith.index_cast %107 : i32 to index
    %c0_35 = arith.constant 0 : index
    %109 = vector.load %arg9[%108, %c0_35] : memref<64x128xf32, #tpu.memory_space<vmem>>, vector<8x128xf32>
    %cst_36 = arith.constant dense<0.000000e+00> : vector<8x128xf32>
    %110 = tpu.matmul %105, %7, %cst_36 {dimension_numbers = #tpu.dot_dimension_numbers<[1], [0], [0], [1], [0, 0, 1, 1], [], []>} : vector<8x32xf32>, vector<32x128xf32>, vector<8x128xf32> -> vector<8x128xf32>
    %111 = arith.addf %109, %110 : vector<8x128xf32>
    %112 = arith.negf %111 : vector<8x128xf32>
    %113 = math.exp %112 : vector<8x128xf32>
    %cst_37 = arith.constant 1.000000e+00 : f32
    %114 = vector.broadcast %cst_37 : f32 to vector<8x128xf32>
    %115 = arith.addf %114, %113 : vector<8x128xf32>
    %116 = arith.divf %114, %115 : vector<8x128xf32>
    %117 = vector.extract_strided_slice %116 {offsets = [0, 0], sizes = [8, 32], strides = [1, 1]} : vector<8x128xf32> to vector<8x32xf32>
    %118 = vector.extract_strided_slice %116 {offsets = [0, 32], sizes = [8, 32], strides = [1, 1]} : vector<8x128xf32> to vector<8x32xf32>
    %119 = vector.extract_strided_slice %116 {offsets = [0, 64], sizes = [8, 32], strides = [1, 1]} : vector<8x128xf32> to vector<8x32xf32>
    %cst_38 = arith.constant 2.000000e+00 : f32
    %120 = vector.broadcast %cst_38 : f32 to vector<8x32xf32>
    %121 = arith.mulf %120, %119 : vector<8x32xf32>
    %cst_39 = arith.constant 1.000000e+00 : f32
    %122 = vector.broadcast %cst_39 : f32 to vector<8x32xf32>
    %123 = arith.subf %121, %122 : vector<8x32xf32>
    %124 = vector.extract_strided_slice %116 {offsets = [0, 96], sizes = [8, 32], strides = [1, 1]} : vector<8x128xf32> to vector<8x32xf32>
    %125 = arith.mulf %118, %103 : vector<8x32xf32>
    %126 = arith.mulf %117, %123 : vector<8x32xf32>
    %127 = arith.addf %125, %126 : vector<8x32xf32>
    %128 = math.tanh %127 : vector<8x32xf32>
    %129 = arith.mulf %124, %128 : vector<8x32xf32>
    %c5_i32 = arith.constant 5 : i32
    %c8_i32_40 = arith.constant 8 : i32
    %130 = arith.muli %c5_i32, %c8_i32_40 : i32
    %131 = tpu.assume_multiple %130, 8 : i32
    %132 = arith.index_cast %131 : i32 to index
    %c0_41 = arith.constant 0 : index
    %133 = vector.load %arg9[%132, %c0_41] : memref<64x128xf32, #tpu.memory_space<vmem>>, vector<8x128xf32>
    %cst_42 = arith.constant dense<0.000000e+00> : vector<8x128xf32>
    %134 = tpu.matmul %129, %7, %cst_42 {dimension_numbers = #tpu.dot_dimension_numbers<[1], [0], [0], [1], [0, 0, 1, 1], [], []>} : vector<8x32xf32>, vector<32x128xf32>, vector<8x128xf32> -> vector<8x128xf32>
    %135 = arith.addf %133, %134 : vector<8x128xf32>
    %136 = arith.negf %135 : vector<8x128xf32>
    %137 = math.exp %136 : vector<8x128xf32>
    %cst_43 = arith.constant 1.000000e+00 : f32
    %138 = vector.broadcast %cst_43 : f32 to vector<8x128xf32>
    %139 = arith.addf %138, %137 : vector<8x128xf32>
    %140 = arith.divf %138, %139 : vector<8x128xf32>
    %141 = vector.extract_strided_slice %140 {offsets = [0, 0], sizes = [8, 32], strides = [1, 1]} : vector<8x128xf32> to vector<8x32xf32>
    %142 = vector.extract_strided_slice %140 {offsets = [0, 32], sizes = [8, 32], strides = [1, 1]} : vector<8x128xf32> to vector<8x32xf32>
    %143 = vector.extract_strided_slice %140 {offsets = [0, 64], sizes = [8, 32], strides = [1, 1]} : vector<8x128xf32> to vector<8x32xf32>
    %cst_44 = arith.constant 2.000000e+00 : f32
    %144 = vector.broadcast %cst_44 : f32 to vector<8x32xf32>
    %145 = arith.mulf %144, %143 : vector<8x32xf32>
    %cst_45 = arith.constant 1.000000e+00 : f32
    %146 = vector.broadcast %cst_45 : f32 to vector<8x32xf32>
    %147 = arith.subf %145, %146 : vector<8x32xf32>
    %148 = vector.extract_strided_slice %140 {offsets = [0, 96], sizes = [8, 32], strides = [1, 1]} : vector<8x128xf32> to vector<8x32xf32>
    %149 = arith.mulf %142, %127 : vector<8x32xf32>
    %150 = arith.mulf %141, %147 : vector<8x32xf32>
    %151 = arith.addf %149, %150 : vector<8x32xf32>
    %152 = math.tanh %151 : vector<8x32xf32>
    %153 = arith.mulf %148, %152 : vector<8x32xf32>
    %c6_i32 = arith.constant 6 : i32
    %c8_i32_46 = arith.constant 8 : i32
    %154 = arith.muli %c6_i32, %c8_i32_46 : i32
    %155 = tpu.assume_multiple %154, 8 : i32
    %156 = arith.index_cast %155 : i32 to index
    %c0_47 = arith.constant 0 : index
    %157 = vector.load %arg9[%156, %c0_47] : memref<64x128xf32, #tpu.memory_space<vmem>>, vector<8x128xf32>
    %cst_48 = arith.constant dense<0.000000e+00> : vector<8x128xf32>
    %158 = tpu.matmul %153, %7, %cst_48 {dimension_numbers = #tpu.dot_dimension_numbers<[1], [0], [0], [1], [0, 0, 1, 1], [], []>} : vector<8x32xf32>, vector<32x128xf32>, vector<8x128xf32> -> vector<8x128xf32>
    %159 = arith.addf %157, %158 : vector<8x128xf32>
    %160 = arith.negf %159 : vector<8x128xf32>
    %161 = math.exp %160 : vector<8x128xf32>
    %cst_49 = arith.constant 1.000000e+00 : f32
    %162 = vector.broadcast %cst_49 : f32 to vector<8x128xf32>
    %163 = arith.addf %162, %161 : vector<8x128xf32>
    %164 = arith.divf %162, %163 : vector<8x128xf32>
    %165 = vector.extract_strided_slice %164 {offsets = [0, 0], sizes = [8, 32], strides = [1, 1]} : vector<8x128xf32> to vector<8x32xf32>
    %166 = vector.extract_strided_slice %164 {offsets = [0, 32], sizes = [8, 32], strides = [1, 1]} : vector<8x128xf32> to vector<8x32xf32>
    %167 = vector.extract_strided_slice %164 {offsets = [0, 64], sizes = [8, 32], strides = [1, 1]} : vector<8x128xf32> to vector<8x32xf32>
    %cst_50 = arith.constant 2.000000e+00 : f32
    %168 = vector.broadcast %cst_50 : f32 to vector<8x32xf32>
    %169 = arith.mulf %168, %167 : vector<8x32xf32>
    %cst_51 = arith.constant 1.000000e+00 : f32
    %170 = vector.broadcast %cst_51 : f32 to vector<8x32xf32>
    %171 = arith.subf %169, %170 : vector<8x32xf32>
    %172 = vector.extract_strided_slice %164 {offsets = [0, 96], sizes = [8, 32], strides = [1, 1]} : vector<8x128xf32> to vector<8x32xf32>
    %173 = arith.mulf %166, %151 : vector<8x32xf32>
    %174 = arith.mulf %165, %171 : vector<8x32xf32>
    %175 = arith.addf %173, %174 : vector<8x32xf32>
    %176 = math.tanh %175 : vector<8x32xf32>
    %177 = arith.mulf %172, %176 : vector<8x32xf32>
    %c7_i32 = arith.constant 7 : i32
    %c8_i32_52 = arith.constant 8 : i32
    %178 = arith.muli %c7_i32, %c8_i32_52 : i32
    %179 = tpu.assume_multiple %178, 8 : i32
    %180 = arith.index_cast %179 : i32 to index
    %c0_53 = arith.constant 0 : index
    %181 = vector.load %arg9[%180, %c0_53] : memref<64x128xf32, #tpu.memory_space<vmem>>, vector<8x128xf32>
    %cst_54 = arith.constant dense<0.000000e+00> : vector<8x128xf32>
    %182 = tpu.matmul %177, %7, %cst_54 {dimension_numbers = #tpu.dot_dimension_numbers<[1], [0], [0], [1], [0, 0, 1, 1], [], []>} : vector<8x32xf32>, vector<32x128xf32>, vector<8x128xf32> -> vector<8x128xf32>
    %183 = arith.addf %181, %182 : vector<8x128xf32>
    %184 = arith.negf %183 : vector<8x128xf32>
    %185 = math.exp %184 : vector<8x128xf32>
    %cst_55 = arith.constant 1.000000e+00 : f32
    %186 = vector.broadcast %cst_55 : f32 to vector<8x128xf32>
    %187 = arith.addf %186, %185 : vector<8x128xf32>
    %188 = arith.divf %186, %187 : vector<8x128xf32>
    %189 = vector.extract_strided_slice %188 {offsets = [0, 0], sizes = [8, 32], strides = [1, 1]} : vector<8x128xf32> to vector<8x32xf32>
    %190 = vector.extract_strided_slice %188 {offsets = [0, 32], sizes = [8, 32], strides = [1, 1]} : vector<8x128xf32> to vector<8x32xf32>
    %191 = vector.extract_strided_slice %188 {offsets = [0, 64], sizes = [8, 32], strides = [1, 1]} : vector<8x128xf32> to vector<8x32xf32>
    %cst_56 = arith.constant 2.000000e+00 : f32
    %192 = vector.broadcast %cst_56 : f32 to vector<8x32xf32>
    %193 = arith.mulf %192, %191 : vector<8x32xf32>
    %cst_57 = arith.constant 1.000000e+00 : f32
    %194 = vector.broadcast %cst_57 : f32 to vector<8x32xf32>
    %195 = arith.subf %193, %194 : vector<8x32xf32>
    %196 = vector.extract_strided_slice %188 {offsets = [0, 96], sizes = [8, 32], strides = [1, 1]} : vector<8x128xf32> to vector<8x32xf32>
    %197 = arith.mulf %190, %175 : vector<8x32xf32>
    %198 = arith.mulf %189, %195 : vector<8x32xf32>
    %199 = arith.addf %197, %198 : vector<8x32xf32>
    %200 = math.tanh %199 : vector<8x32xf32>
    %201 = arith.mulf %196, %200 : vector<8x32xf32>
    %c8_i32_58 = arith.constant 8 : i32
    %c0_59 = arith.constant 0 : index
    %c0_60 = arith.constant 0 : index
    %202 = vector.load %arg4[%c0_59, %c0_60] : memref<32x128xf32, #tpu.memory_space<vmem>>, vector<32x128xf32>
    %cst_61 = arith.constant dense<0.000000e+00> : vector<8x128xf32>
    %203 = tpu.matmul %201, %202, %cst_61 {dimension_numbers = #tpu.dot_dimension_numbers<[1], [0], [0], [1], [0, 0, 1, 1], [], []>} : vector<8x32xf32>, vector<32x128xf32>, vector<8x128xf32> -> vector<8x128xf32>
    %c0_62 = arith.constant 0 : index
    %c0_63 = arith.constant 0 : index
    %204 = vector.load %arg5[%c0_62, %c0_63] : memref<1x128xf32, #tpu.memory_space<vmem>>, vector<1x128xf32>
    %205 = vector.broadcast %204 : vector<1x128xf32> to vector<8x128xf32>
    %206 = arith.addf %203, %205 : vector<8x128xf32>
    %cst_64 = arith.constant 0.000000e+00 : f32
    %207 = vector.broadcast %cst_64 : f32 to vector<8x128xf32>
    %208 = arith.maximumf %206, %207 : vector<8x128xf32>
    %c0_65 = arith.constant 0 : index
    %c0_66 = arith.constant 0 : index
    %209 = vector.load %arg6[%c0_65, %c0_66] : memref<128x128xf32, #tpu.memory_space<vmem>>, vector<128x128xf32>
    %cst_67 = arith.constant dense<0.000000e+00> : vector<8x128xf32>
    %210 = tpu.matmul %208, %209, %cst_67 {dimension_numbers = #tpu.dot_dimension_numbers<[1], [0], [0], [1], [0, 0, 1, 1], [], []>} : vector<8x128xf32>, vector<128x128xf32>, vector<8x128xf32> -> vector<8x128xf32>
    %c0_68 = arith.constant 0 : index
    %c0_69 = arith.constant 0 : index
    %211 = vector.load %arg7[%c0_68, %c0_69] : memref<1x128xf32, #tpu.memory_space<vmem>>, vector<1x128xf32>
    %212 = vector.broadcast %211 : vector<1x128xf32> to vector<8x128xf32>
    %213 = arith.addf %210, %212 : vector<8x128xf32>
    %c0_70 = arith.constant 0 : index
    %c0_71 = arith.constant 0 : index
    %214 = vector.load %arg8[%c0_70, %c0_71] : memref<8x128xf32, #tpu.memory_space<vmem>>, vector<8x128xf32>
    tpu.vector_store %arg8[%c0_70, %c0_71], %213 {strides = array<i32>} : memref<8x128xf32, #tpu.memory_space<vmem>>, vector<8x128xf32>,
    return
  }
}

</mosaic_0001>

<llo_original>
// kernel: tpu_custom_call.1
$region0: #{tpu_custom_call.1}
  #allocation0 [shape = 'u32[]', space=smem, size = 0x4, offset = 0x4, fixed_abs, tag = 'smem constant byte address 0x4 - core index']
  #allocation1 [shape = 'u32[144,128]{1,0:T(1,128)}', space=vmem, size = 0x12000, scoped, tag = 'internal scratch']
  #allocation2 [shape = 'f32[64,128]{1,0:T(8,128)}', space=vmem, size = 0x8000, scoped, tag = 'scratch operand']
  %s0 = inlined_call_operand.vmem [shape: bf16[64,16], index: 0, kind: input, shape index: {}]
  %s1 = inlined_call_operand.vmem [shape: bf16[16,128], index: 1, kind: input, shape index: {}]
  %s2 = inlined_call_operand.vmem [shape: f32[32,128], index: 2, kind: input, shape index: {}]
  %s3 = inlined_call_operand.vmem [shape: f32[1,128], index: 3, kind: input, shape index: {}]
  %s4 = inlined_call_operand.hbm [shape: f32[32,128], index: 4, kind: input, shape index: {}]
  %s5 = inlined_call_operand.vmem [shape: f32[1,128], index: 5, kind: input, shape index: {}]
  %s6 = inlined_call_operand.hbm [shape: f32[128,128], index: 6, kind: input, shape index: {}]
  %s7 = inlined_call_operand.vmem [shape: f32[1,128], index: 7, kind: input, shape index: {}]
  %s8 = inlined_call_operand.hbm [shape: f32[8,128], index: 8, kind: output, shape index: {}]
  %s9 = sld [smem:[#allocation0]]
  $region50: #{tpu_custom_call.1} parent=0
    _
  %s11 = ssub.s32 1, %s9
  %s12 = scalar_select 0, %s11, %s9
  $region1: #{tpu_custom_call.1} parent=0
    #allocation3 [shape = 'u8[16384]{0}', space=vmem, size = 0x4000, scoped, tag = 'input window, operand 4, single buffered']
    #allocation4 [shape = 's32[1]{0}', space=sflag, size = 0x4, scoped, tag = 'scoped memory for tpu_custom_call.1']
    #allocation5 [shape = 's32[1]{0}', space=sflag, size = 0x4, scoped, tag = 'scoped memory for tpu_custom_call.1']
    #allocation6 [shape = 'u8[65536]{0}', space=vmem, size = 0x10000, scoped, tag = 'input window, operand 6, single buffered']
    #allocation7 [shape = 's32[1]{0}', space=sflag, size = 0x4, scoped, tag = 'scoped memory for tpu_custom_call.1']
    #allocation8 [shape = 'u8[4096]{0}', space=vmem, size = 0x1000, scoped, tag = 'output window, operand 0, single buffered']
    %13 = vsyncpa [#allocation4], 0
    %14 = vsyncpa [#allocation7], 0
    %15 = vsyncpa [#allocation5], 0
    // Predicated region
    $region2: #{tpu_custom_call.1} parent=1 // pred_check
      _
    $region3: #{tpu_custom_call.1} parent=1 // pred_check_branch
      %17 = sbr.rel (0) target = $region5
    $region4: #{tpu_custom_call.1} parent=1 // pred_region
      _
    $region5: #{tpu_custom_call.1} parent=1 // pred_fallthru
      _
    // Predicated region
    $region6: #{tpu_custom_call.1} parent=1 // pred_check
      _
    $region7: #{tpu_custom_call.1} parent=1 // pred_check_branch
      %19 = sbr.rel (0) target = $region9
    $region8: #{tpu_custom_call.1} parent=1 // pred_region
      _
    $region9: #{tpu_custom_call.1} parent=1 // pred_fallthru
      _
    // Predicated region
    $region10: #{tpu_custom_call.1} parent=1 // pred_check
      _
    $region11: #{tpu_custom_call.1} parent=1 // pred_check_branch
      %21 = sbr.rel (0) target = $region13
    $region12: #{tpu_custom_call.1} parent=1 // pred_region
      _
    $region13: #{tpu_custom_call.1} parent=1 // pred_fallthru
      _
    // Predicated region
    $region14: #{tpu_custom_call.1} parent=1 // pred_check
      _
    $region15: #{tpu_custom_call.1} parent=1 // pred_check_branch
      %23 = sbr.rel (0) target = $region17
    $region16: #{tpu_custom_call.1} parent=1 // pred_region
      _
    $region17: #{tpu_custom_call.1} parent=1 // pred_fallthru
      _
    // Predicated region
    $region18: #{tpu_custom_call.1} parent=1 // pred_check
      _
    $region19: #{tpu_custom_call.1} parent=1 // pred_check_branch
      %25 = sbr.rel (0) target = $region21
    $region20: #{tpu_custom_call.1} parent=1 // pred_region
      %s27 = ssub.s32 512, 512
      %28 = vsyncadd [#allocation4], %s27
      %s29 = sshll.u32 [#allocation3], 4
      %s30 = int_to_ptr.vmem [resolvable:$true] %s29
      %35 = dma.hbm_to_vmem [thread:$0]  %s4, 512, %s30, [#allocation4], 128, 128, 8
    $region21: #{tpu_custom_call.1} parent=1 // pred_fallthru
      _
    // Predicated region
    $region22: #{tpu_custom_call.1} parent=1 // pred_check
      _
    $region23: #{tpu_custom_call.1} parent=1 // pred_check_branch
      %37 = sbr.rel (0) target = $region25
    $region24: #{tpu_custom_call.1} parent=1 // pred_region
      _
    $region25: #{tpu_custom_call.1} parent=1 // pred_fallthru
      _
    // Predicated region
    $region26: #{tpu_custom_call.1} parent=1 // pred_check
      _
    $region27: #{tpu_custom_call.1} parent=1 // pred_check_branch
      %39 = sbr.rel (0) target = $region29
    $region28: #{tpu_custom_call.1} parent=1 // pred_region
      %s41 = ssub.s32 2048, 2048
      %42 = vsyncadd [#allocation7], %s41
      %s43 = sshll.u32 [#allocation6], 4
      %s44 = int_to_ptr.vmem [resolvable:$true] %s43
      %49 = dma.hbm_to_vmem [thread:$0]  %s6, 2048, %s44, [#allocation7], 128, 128, 8
    $region29: #{tpu_custom_call.1} parent=1 // pred_fallthru
      _
    // Predicated region
    $region30: #{tpu_custom_call.1} parent=1 // pred_check
      _
    $region31: #{tpu_custom_call.1} parent=1 // pred_check_branch
      %51 = sbr.rel (0) target = $region33
    $region32: #{tpu_custom_call.1} parent=1 // pred_region
      _
    $region33: #{tpu_custom_call.1} parent=1 // pred_fallthru
      _
    // Predicated region
    $region34: #{tpu_custom_call.1} parent=1 // pred_check
      _
    $region35: #{tpu_custom_call.1} parent=1 // pred_check_branch
      %53 = sbr.rel (0) target = $region37
    $region36: #{tpu_custom_call.1} parent=1 // pred_region
      %54 = dma.done [#allocation4], 512
    $region37: #{tpu_custom_call.1} parent=1 // pred_fallthru
      _
    // Predicated region
    $region38: #{tpu_custom_call.1} parent=1 // pred_check
      _
    $region39: #{tpu_custom_call.1} parent=1 // pred_check_branch
      %56 = sbr.rel (0) target = $region41
    $region40: #{tpu_custom_call.1} parent=1 // pred_region
      %57 = dma.done [#allocation7], 2048
    $region41: #{tpu_custom_call.1} parent=1 // pred_fallthru
      _
    %v59 = vld [vmem:[%s0] sm:$0xf]
    %v60 = vld [vmem:[%s0 + $0x4] sm:$0xf]
    %v61 = vld [vmem:[%s0 + $0x8] sm:$0xf]
    %v62 = vld [vmem:[%s0 + $0xc] sm:$0xf]
    %v63 = vld [vmem:[%s0 + $0x10] sm:$0xf]
    %v64 = vld [vmem:[%s0 + $0x14] sm:$0xf]
    %v65 = vld [vmem:[%s0 + $0x18] sm:$0xf]
    %v66 = vld [vmem:[%s0 + $0x1c] sm:$0xf]
    %v67 = vld [vmem:[%s1] sm:$0xf]
    %v68 = vld [vmem:[%s1 + $0x4] sm:$0xf]
    %v69 = vld [vmem:[%s3] sm:$0x1]
    %v71 = vlaneseq
    %v72 = vshrl.u32 %v71, 7
    %v73 = vsub.s32 0, %v72
    %v74 = vrot.slane %v69, %v73
    %v84 = vunpack.c.l.b16 %v59
    %v85 = vunpack.c.l.b16 %v60
    %v86 = vunpack.c.l.b16 %v61
    %v87 = vunpack.c.l.b16 %v62
    %v88 = vunpack.c.l.b16 %v63
    %v89 = vunpack.c.l.b16 %v64
    %v90 = vunpack.c.l.b16 %v65
    %v91 = vunpack.c.l.b16 %v66
    %v92 = vpack.c.b16 %v85, %v84
    %v93 = vpack.c.b16 %v87, %v86
    %v94 = vpack.c.b16 %v89, %v88
    %v95 = vpack.c.b16 %v91, %v90
    %v98 = vunpack.c.l.b16 %v67
    %v99 = vunpack.c.l.b16 %v68
    %v100 = vpack.c.b16 %v99, %v98
    %vm102 = vcmask 130048
    %v104 = vsel %vm102, %v92, 0
    %v107 = vsel %vm102, %v93, 0
    %v110 = vsel %vm102, %v94, 0
    %v113 = vsel %vm102, %v95, 0
    %115 = vmatprep.subr.bf16.mxu0 0
    %116 = vmatpush1.bf16.msra.mxu0 %v100
    %117 = vmatprep.subr.bf16.mxu0 0
    %118 = vmatpush1.bf16.msra.mxu0 0
    %119 = vmatprep.subr.bf16.mxu0 0
    %120 = vmatpush1.bf16.msra.mxu0 0
    %121 = vmatprep.subr.bf16.mxu0 0
    %122 = vmatpush1.bf16.msra.mxu0 0
    %123 = vmatprep.subr.bf16.mxu0 0
    %124 = vmatpush1.bf16.msra.mxu0 0
    %125 = vmatprep.subr.bf16.mxu0 0
    %126 = vmatpush1.bf16.msra.mxu0 0
    %127 = vmatprep.subr.bf16.mxu0 0
    %128 = vmatpush1.bf16.msra.mxu0 0
    %129 = vmatprep.subr.bf16.mxu0 0
    %130 = vmatpush1.bf16.msra.mxu0 0
    %131 = vmatprep.subr.bf16.mxu0 0
    %132 = vmatpush1.bf16.msra.mxu0 0
    %133 = vmatprep.subr.bf16.mxu0 0
    %134 = vmatpush1.bf16.msra.mxu0 0
    %135 = vmatprep.subr.bf16.mxu0 0
    %136 = vmatpush1.bf16.msra.mxu0 0
    %137 = vmatprep.subr.bf16.mxu0 0
    %138 = vmatpush1.bf16.msra.mxu0 0
    %139 = vmatprep.subr.bf16.mxu0 0
    %140 = vmatpush1.bf16.msra.mxu0 0
    %141 = vmatprep.subr.bf16.mxu0 0
    %142 = vmatpush1.bf16.msra.mxu0 0
    %143 = vmatprep.subr.bf16.mxu0 0
    %144 = vmatpush1.bf16.msra.mxu0 0
    %145 = vmatprep.subr.bf16.mxu0 0
    %146 = vmatpush1.bf16.msra.mxu0 0
    %147 = vmatprep.mubr.bf16.mxu0 0
    %148 = vmatmul.mubr.bf16.gmra.mrb[0].mxu0 %v104
    %v149 = vpop.f32.mrb[0].mxu0
    %v150 = vadd.f32 %v74, %v149
    %v151 = vpop.f32.mrb[0].mxu0
    %v152 = vpop.f32.mrb[0].mxu0
    %v153 = vadd.f32 %v74, %v152
    %v154 = vpop.f32.mrb[0].mxu0
    %155 = vmatprep.mubr.bf16.mxu0 0
    %156 = vmatmul.mubr.bf16.gmra.mrb[0].mxu0 %v107
    %v157 = vpop.f32.mrb[0].mxu0
    %v158 = vadd.f32 %v74, %v157
    %v159 = vpop.f32.mrb[0].mxu0
    %v160 = vpop.f32.mrb[0].mxu0
    %v161 = vadd.f32 %v74, %v160
    %v162 = vpop.f32.mrb[0].mxu0
    %163 = vmatprep.mubr.bf16.mxu0 0
    %164 = vmatmul.mubr.bf16.gmra.mrb[0].mxu0 %v110
    %v165 = vpop.f32.mrb[0].mxu0
    %v166 = vadd.f32 %v74, %v165
    %v167 = vpop.f32.mrb[0].mxu0
    %v168 = vpop.f32.mrb[0].mxu0
    %v169 = vadd.f32 %v74, %v168
    %v170 = vpop.f32.mrb[0].mxu0
    %171 = vmatprep.mubr.bf16.mxu0 0
    %172 = vmatmul.mubr.bf16.gmra.mrb[0].mxu0 %v113
    %v173 = vpop.f32.mrb[0].mxu0
    %v174 = vadd.f32 %v74, %v173
    %v175 = vpop.f32.mrb[0].mxu0
    %v176 = vpop.f32.mrb[0].mxu0
    %v177 = vadd.f32 %v74, %v176
    %v178 = vpop.f32.mrb[0].mxu0
    %179 = vdwg.mxu0
    %180 = vst [vmem:[#allocation2] sm:$0xff] %v150
    %181 = vst [vmem:[#allocation2 + $0x8] sm:$0xff] %v153
    %182 = vst [vmem:[#allocation2 + $0x10] sm:$0xff] %v158
    %183 = vst [vmem:[#allocation2 + $0x18] sm:$0xff] %v161
    %184 = vst [vmem:[#allocation2 + $0x20] sm:$0xff] %v166
    %185 = vst [vmem:[#allocation2 + $0x28] sm:$0xff] %v169
    %186 = vst [vmem:[#allocation2 + $0x30] sm:$0xff] %v174
    %187 = vst [vmem:[#allocation2 + $0x38] sm:$0xff] %v177
    %v188 = vld [vmem:[%s2] sm:$0xff]
    %v189 = vld [vmem:[%s2 + $0x8] sm:$0xff]
    %v190 = vld [vmem:[%s2 + $0x10] sm:$0xff]
    %v191 = vld [vmem:[%s2 + $0x18] sm:$0xff]
    %v192 = vld [vmem:[#allocation2] sm:$0xff]
    %vm193 = vcmask 261120
    %v195 = vsel %vm193, 0.0, 0
    %197 = vmatprep.subr.mxu0 0.0
    %198 = vmatpush1.msra.mxu0 %v188
    %199 = vmatprep.subr.mxu0 0.0
    %200 = vmatpush1.msra.mxu0 %v189
    %201 = vmatprep.subr.mxu0 0.0
    %202 = vmatpush1.msra.mxu0 %v190
    %203 = vmatprep.subr.mxu0 0.0
    %204 = vmatpush1.msra.mxu0 %v191
    %205 = vmatprep.subr.mxu0 0.0
    %206 = vmatpush1.msra.mxu0 0.0
    %207 = vmatprep.subr.mxu0 0.0
    %208 = vmatpush1.msra.mxu0 0.0
    %209 = vmatprep.subr.mxu0 0.0
    %210 = vmatpush1.msra.mxu0 0.0
    %211 = vmatprep.subr.mxu0 0.0
    %212 = vmatpush1.msra.mxu0 0.0
    %213 = vmatprep.subr.mxu0 0.0
    %214 = vmatpush1.msra.mxu0 0.0
    %215 = vmatprep.subr.mxu0 0.0
    %216 = vmatpush1.msra.mxu0 0.0
    %217 = vmatprep.subr.mxu0 0.0
    %218 = vmatpush1.msra.mxu0 0.0
    %219 = vmatprep.subr.mxu0 0.0
    %220 = vmatpush1.msra.mxu0 0.0
    %221 = vmatprep.subr.mxu0 0.0
    %222 = vmatpush1.msra.mxu0 0.0
    %223 = vmatprep.subr.mxu0 0.0
    %224 = vmatpush1.msra.mxu0 0.0
    %225 = vmatprep.subr.mxu0 0.0
    %226 = vmatpush1.msra.mxu0 0.0
    %227 = vmatprep.subr.mxu0 0.0
    %228 = vmatpush1.msra.mxu0 0.0
    %229 = vmatprep.subr.mxu0 0.0
    %230 = vmatpush1.msra.mxu0 0.0
    %231 = vmatprep.subr.mxu0 0.0
    %232 = vmatpush1.msra.mxu0 0.0
    %233 = vmatprep.subr.mxu0 0.0
    %234 = vmatpush1.msra.mxu0 0.0
    %235 = vmatprep.subr.mxu0 0.0
    %236 = vmatpush1.msra.mxu0 0.0
    %237 = vmatprep.subr.mxu0 0.0
    %238 = vmatpush1.msra.mxu0 0.0
    %239 = vmatprep.subr.mxu0 0.0
    %240 = vmatpush1.msra.mxu0 0.0
    %241 = vmatprep.subr.mxu0 0.0
    %242 = vmatpush1.msra.mxu0 0.0
    %243 = vmatprep.subr.mxu0 0.0
    %244 = vmatpush1.msra.mxu0 0.0
    %245 = vmatprep.subr.mxu0 0.0
    %246 = vmatpush1.msra.mxu0 0.0
    %247 = vmatprep.subr.mxu0 0.0
    %248 = vmatpush1.msra.mxu0 0.0
    %249 = vmatprep.subr.mxu0 0.0
    %250 = vmatpush1.msra.mxu0 0.0
    %251 = vmatprep.subr.mxu0 0.0
    %252 = vmatpush1.msra.mxu0 0.0
    %253 = vmatprep.subr.mxu0 0.0
    %254 = vmatpush1.msra.mxu0 0.0
    %255 = vmatprep.subr.mxu0 0.0
    %256 = vmatpush1.msra.mxu0 0.0
    %257 = vmatprep.subr.mxu0 0.0
    %258 = vmatpush1.msra.mxu0 0.0
    %259 = vmatprep.subr.mxu0 0.0
    %260 = vmatpush1.msra.mxu0 0.0
    %261 = vmatprep.mubr.f32.mxu0 0.0
    %262 = vmatmul.mubr.f32.gmra.mrb[0].mxu0 %v195
    %v263 = vpop.f32.mrb[0].mxu0
    %v264 = vadd.f32 0.0, %v263
    %v265 = vpop.f32.mrb[0].mxu0
    %266 = vdwg.mxu0
    %v267 = vadd.f32 %v192, %v264
    %v268 = vxor.u32 %v267, 2147483648
    %v269 = vmul.f32 %v268, 1.442695
    %v270 = vpow.pop %v269
    %v271 = vadd.f32 %v270, 1.0
    %v272 = vrcp.pop %v271
    %v273 = vmul.f32 1.0, %v272
    %v274 = vmul.f32 %v273, 2.0
    %v275 = vsub.f32 %v274, 1.0
    %v276 = vmul.f32 %v273, 0.0
    %278 = vrot.lane.b32.xlu0 %v275, 64
    %v279 = vpop.permute.xlu0 %278
    %v281 = vmul.f32 %v273, %v279
    %283 = vrot.lane.b32.xlu0 %v281, 32
    %v284 = vpop.permute.xlu0 %283
    %v286 = vadd.f32 %v276, %v284
    %v287 = vtanh.pop %v286
    %289 = vrot.lane.b32.xlu0 %v287, 64
    %v290 = vpop.permute.xlu0 %289
    %v292 = vmul.f32 %v273, %v290
    %s293 = scalar_lea.vmem [#allocation2], 8
    %v294 = vld [vmem:[%s293] sm:$0xff]
    %296 = vrot.lane.b32.xlu0 %v292, 32
    %v297 = vpop.permute.xlu0 %296
    %v298 = vsel %vm193, %v297, 0
    %300 = vmatprep.subr.mxu0 0.0
    %301 = vmatpush1.msra.mxu0 %v188
    %302 = vmatprep.subr.mxu0 0.0
    %303 = vmatpush1.msra.mxu0 %v189
    %304 = vmatprep.subr.mxu0 0.0
    %305 = vmatpush1.msra.mxu0 %v190
    %306 = vmatprep.subr.mxu0 0.0
    %307 = vmatpush1.msra.mxu0 %v191
    %308 = vmatprep.subr.mxu0 0.0
    %309 = vmatpush1.msra.mxu0 0.0
    %310 = vmatprep.subr.mxu0 0.0
    %311 = vmatpush1.msra.mxu0 0.0
    %312 = vmatprep.subr.mxu0 0.0
    %313 = vmatpush1.msra.mxu0 0.0
    %314 = vmatprep.subr.mxu0 0.0
    %315 = vmatpush1.msra.mxu0 0.0
    %316 = vmatprep.subr.mxu0 0.0
    %317 = vmatpush1.msra.mxu0 0.0
    %318 = vmatprep.subr.mxu0 0.0
    %319 = vmatpush1.msra.mxu0 0.0
    %320 = vmatprep.subr.mxu0 0.0
    %321 = vmatpush1.msra.mxu0 0.0
    %322 = vmatprep.subr.mxu0 0.0
    %323 = vmatpush1.msra.mxu0 0.0
    %324 = vmatprep.subr.mxu0 0.0
    %325 = vmatpush1.msra.mxu0 0.0
    %326 = vmatprep.subr.mxu0 0.0
    %327 = vmatpush1.msra.mxu0 0.0
    %328 = vmatprep.subr.mxu0 0.0
    %329 = vmatpush1.msra.mxu0 0.0
    %330 = vmatprep.subr.mxu0 0.0
    %331 = vmatpush1.msra.mxu0 0.0
    %332 = vmatprep.subr.mxu0 0.0
    %333 = vmatpush1.msra.mxu0 0.0
    %334 = vmatprep.subr.mxu0 0.0
    %335 = vmatpush1.msra.mxu0 0.0
    %336 = vmatprep.subr.mxu0 0.0
    %337 = vmatpush1.msra.mxu0 0.0
    %338 = vmatprep.subr.mxu0 0.0
    %339 = vmatpush1.msra.mxu0 0.0
    %340 = vmatprep.subr.mxu0 0.0
    %341 = vmatpush1.msra.mxu0 0.0
    %342 = vmatprep.subr.mxu0 0.0
    %343 = vmatpush1.msra.mxu0 0.0
    %344 = vmatprep.subr.mxu0 0.0
    %345 = vmatpush1.msra.mxu0 0.0
    %346 = vmatprep.subr.mxu0 0.0
    %347 = vmatpush1.msra.mxu0 0.0
    %348 = vmatprep.subr.mxu0 0.0
    %349 = vmatpush1.msra.mxu0 0.0
    %350 = vmatprep.subr.mxu0 0.0
    %351 = vmatpush1.msra.mxu0 0.0
    %352 = vmatprep.subr.mxu0 0.0
    %353 = vmatpush1.msra.mxu0 0.0
    %354 = vmatprep.subr.mxu0 0.0
    %355 = vmatpush1.msra.mxu0 0.0
    %356 = vmatprep.subr.mxu0 0.0
    %357 = vmatpush1.msra.mxu0 0.0
    %358 = vmatprep.subr.mxu0 0.0
    %359 = vmatpush1.msra.mxu0 0.0
    %360 = vmatprep.subr.mxu0 0.0
    %361 = vmatpush1.msra.mxu0 0.0
    %362 = vmatprep.subr.mxu0 0.0
    %363 = vmatpush1.msra.mxu0 0.0
    %364 = vmatprep.mubr.f32.mxu0 0.0
    %365 = vmatmul.mubr.f32.gmra.mrb[0].mxu0 %v298
    %v366 = vpop.f32.mrb[0].mxu0
    %v367 = vadd.f32 0.0, %v366
    %v368 = vpop.f32.mrb[0].mxu0
    %369 = vdwg.mxu0
    %v370 = vadd.f32 %v294, %v367
    %v371 = vxor.u32 %v370, 2147483648
    %v372 = vmul.f32 %v371, 1.442695
    %v373 = vpow.pop %v372
    %v374 = vadd.f32 %v373, 1.0
    %v375 = vrcp.pop %v374
    %v376 = vmul.f32 1.0, %v375
    %v377 = vmul.f32 %v376, 2.0
    %v378 = vsub.f32 %v377, 1.0
    %v379 = vmul.f32 %v376, %v286
    %381 = vrot.lane.b32.xlu0 %v378, 64
    %v382 = vpop.permute.xlu0 %381
    %v384 = vmul.f32 %v376, %v382
    %386 = vrot.lane.b32.xlu0 %v384, 32
    %v387 = vpop.permute.xlu0 %386
    %v389 = vadd.f32 %v379, %v387
    %v390 = vtanh.pop %v389
    %392 = vrot.lane.b32.xlu0 %v390, 64
    %v393 = vpop.permute.xlu0 %392
    %v395 = vmul.f32 %v376, %v393
    %s396 = scalar_lea.vmem [#allocation2], 16
    %v397 = vld [vmem:[%s396] sm:$0xff]
    %399 = vrot.lane.b32.xlu0 %v395, 32
    %v400 = vpop.permute.xlu0 %399
    %v401 = vsel %vm193, %v400, 0
    %403 = vmatprep.subr.mxu0 0.0
    %404 = vmatpush1.msra.mxu0 %v188
    %405 = vmatprep.subr.mxu0 0.0
    %406 = vmatpush1.msra.mxu0 %v189
    %407 = vmatprep.subr.mxu0 0.0
    %408 = vmatpush1.msra.mxu0 %v190
    %409 = vmatprep.subr.mxu0 0.0
    %410 = vmatpush1.msra.mxu0 %v191
    %411 = vmatprep.subr.mxu0 0.0
    %412 = vmatpush1.msra.mxu0 0.0
    %413 = vmatprep.subr.mxu0 0.0
    %414 = vmatpush1.msra.mxu0 0.0
    %415 = vmatprep.subr.mxu0 0.0
    %416 = vmatpush1.msra.mxu0 0.0
    %417 = vmatprep.subr.mxu0 0.0
    %418 = vmatpush1.msra.mxu0 0.0
    %419 = vmatprep.subr.mxu0 0.0
    %420 = vmatpush1.msra.mxu0 0.0
    %421 = vmatprep.subr.mxu0 0.0
    %422 = vmatpush1.msra.mxu0 0.0
    %423 = vmatprep.subr.mxu0 0.0
    %424 = vmatpush1.msra.mxu0 0.0
    %425 = vmatprep.subr.mxu0 0.0
    %426 = vmatpush1.msra.mxu0 0.0
    %427 = vmatprep.subr.mxu0 0.0
    %428 = vmatpush1.msra.mxu0 0.0
    %429 = vmatprep.subr.mxu0 0.0
    %430 = vmatpush1.msra.mxu0 0.0
    %431 = vmatprep.subr.mxu0 0.0
    %432 = vmatpush1.msra.mxu0 0.0
    %433 = vmatprep.subr.mxu0 0.0
    %434 = vmatpush1.msra.mxu0 0.0
    %435 = vmatprep.subr.mxu0 0.0
    %436 = vmatpush1.msra.mxu0 0.0
    %437 = vmatprep.subr.mxu0 0.0
    %438 = vmatpush1.msra.mxu0 0.0
    %439 = vmatprep.subr.mxu0 0.0
    %440 = vmatpush1.msra.mxu0 0.0
    %441 = vmatprep.subr.mxu0 0.0
    %442 = vmatpush1.msra.mxu0 0.0
    %443 = vmatprep.subr.mxu0 0.0
    %444 = vmatpush1.msra.mxu0 0.0
    %445 = vmatprep.subr.mxu0 0.0
    %446 = vmatpush1.msra.mxu0 0.0
    %447 = vmatprep.subr.mxu0 0.0
    %448 = vmatpush1.msra.mxu0 0.0
    %449 = vmatprep.subr.mxu0 0.0
    %450 = vmatpush1.msra.mxu0 0.0
    %451 = vmatprep.subr.mxu0 0.0
    %452 = vmatpush1.msra.mxu0 0.0
    %453 = vmatprep.subr.mxu0 0.0
    %454 = vmatpush1.msra.mxu0 0.0
    %455 = vmatprep.subr.mxu0 0.0
    %456 = vmatpush1.msra.mxu0 0.0
    %457 = vmatprep.subr.mxu0 0.0
    %458 = vmatpush1.msra.mxu0 0.0
    %459 = vmatprep.subr.mxu0 0.0
    %460 = vmatpush1.msra.mxu0 0.0
    %461 = vmatprep.subr.mxu0 0.0
    %462 = vmatpush1.msra.mxu0 0.0
    %463 = vmatprep.subr.mxu0 0.0
    %464 = vmatpush1.msra.mxu0 0.0
    %465 = vmatprep.subr.mxu0 0.0
    %466 = vmatpush1.msra.mxu0 0.0
    %467 = vmatprep.mubr.f32.mxu0 0.0
    %468 = vmatmul.mubr.f32.gmra.mrb[0].mxu0 %v401
    %v469 = vpop.f32.mrb[0].mxu0
    %v470 = vadd.f32 0.0, %v469
    %v471 = vpop.f32.mrb[0].mxu0
    %472 = vdwg.mxu0
    %v473 = vadd.f32 %v397, %v470
    %v474 = vxor.u32 %v473, 2147483648
    %v475 = vmul.f32 %v474, 1.442695
    %v476 = vpow.pop %v475
    %v477 = vadd.f32 %v476, 1.0
    %v478 = vrcp.pop %v477
    %v479 = vmul.f32 1.0, %v478
    %v480 = vmul.f32 %v479, 2.0
    %v481 = vsub.f32 %v480, 1.0
    %v482 = vmul.f32 %v479, %v389
    %484 = vrot.lane.b32.xlu0 %v481, 64
    %v485 = vpop.permute.xlu0 %484
    %v487 = vmul.f32 %v479, %v485
    %489 = vrot.lane.b32.xlu0 %v487, 32
    %v490 = vpop.permute.xlu0 %489
    %v492 = vadd.f32 %v482, %v490
    %v493 = vtanh.pop %v492
    %495 = vrot.lane.b32.xlu0 %v493, 64
    %v496 = vpop.permute.xlu0 %495
    %v498 = vmul.f32 %v479, %v496
    %s499 = scalar_lea.vmem [#allocation2], 24
    %v500 = vld [vmem:[%s499] sm:$0xff]
    %502 = vrot.lane.b32.xlu0 %v498, 32
    %v503 = vpop.permute.xlu0 %502
    %v504 = vsel %vm193, %v503, 0
    %506 = vmatprep.subr.mxu0 0.0
    %507 = vmatpush1.msra.mxu0 %v188
    %508 = vmatprep.subr.mxu0 0.0
    %509 = vmatpush1.msra.mxu0 %v189
    %510 = vmatprep.subr.mxu0 0.0
    %511 = vmatpush1.msra.mxu0 %v190
    %512 = vmatprep.subr.mxu0 0.0
    %513 = vmatpush1.msra.mxu0 %v191
    %514 = vmatprep.subr.mxu0 0.0
    %515 = vmatpush1.msra.mxu0 0.0
    %516 = vmatprep.subr.mxu0 0.0
    %517 = vmatpush1.msra.mxu0 0.0
    %518 = vmatprep.subr.mxu0 0.0
    %519 = vmatpush1.msra.mxu0 0.0
    %520 = vmatprep.subr.mxu0 0.0
    %521 = vmatpush1.msra.mxu0 0.0
    %522 = vmatprep.subr.mxu0 0.0
    %523 = vmatpush1.msra.mxu0 0.0
    %524 = vmatprep.subr.mxu0 0.0
    %525 = vmatpush1.msra.mxu0 0.0
    %526 = vmatprep.subr.mxu0 0.0
    %527 = vmatpush1.msra.mxu0 0.0
    %528 = vmatprep.subr.mxu0 0.0
    %529 = vmatpush1.msra.mxu0 0.0
    %530 = vmatprep.subr.mxu0 0.0
    %531 = vmatpush1.msra.mxu0 0.0
    %532 = vmatprep.subr.mxu0 0.0
    %533 = vmatpush1.msra.mxu0 0.0
    %534 = vmatprep.subr.mxu0 0.0
    %535 = vmatpush1.msra.mxu0 0.0
    %536 = vmatprep.subr.mxu0 0.0
    %537 = vmatpush1.msra.mxu0 0.0
    %538 = vmatprep.subr.mxu0 0.0
    %539 = vmatpush1.msra.mxu0 0.0
    %540 = vmatprep.subr.mxu0 0.0
    %541 = vmatpush1.msra.mxu0 0.0
    %542 = vmatprep.subr.mxu0 0.0
    %543 = vmatpush1.msra.mxu0 0.0
    %544 = vmatprep.subr.mxu0 0.0
    %545 = vmatpush1.msra.mxu0 0.0
    %546 = vmatprep.subr.mxu0 0.0
    %547 = vmatpush1.msra.mxu0 0.0
    %548 = vmatprep.subr.mxu0 0.0
    %549 = vmatpush1.msra.mxu0 0.0
    %550 = vmatprep.subr.mxu0 0.0
    %551 = vmatpush1.msra.mxu0 0.0
    %552 = vmatprep.subr.mxu0 0.0
    %553 = vmatpush1.msra.mxu0 0.0
    %554 = vmatprep.subr.mxu0 0.0
    %555 = vmatpush1.msra.mxu0 0.0
    %556 = vmatprep.subr.mxu0 0.0
    %557 = vmatpush1.msra.mxu0 0.0
    %558 = vmatprep.subr.mxu0 0.0
    %559 = vmatpush1.msra.mxu0 0.0
    %560 = vmatprep.subr.mxu0 0.0
    %561 = vmatpush1.msra.mxu0 0.0
    %562 = vmatprep.subr.mxu0 0.0
    %563 = vmatpush1.msra.mxu0 0.0
    %564 = vmatprep.subr.mxu0 0.0
    %565 = vmatpush1.msra.mxu0 0.0
    %566 = vmatprep.subr.mxu0 0.0
    %567 = vmatpush1.msra.mxu0 0.0
    %568 = vmatprep.subr.mxu0 0.0
    %569 = vmatpush1.msra.mxu0 0.0
    %570 = vmatprep.mubr.f32.mxu0 0.0
    %571 = vmatmul.mubr.f32.gmra.mrb[0].mxu0 %v504
    %v572 = vpop.f32.mrb[0].mxu0
    %v573 = vadd.f32 0.0, %v572
    %v574 = vpop.f32.mrb[0].mxu0
    %575 = vdwg.mxu0
    %v576 = vadd.f32 %v500, %v573
    %v577 = vxor.u32 %v576, 2147483648
    %v578 = vmul.f32 %v577, 1.442695
    %v579 = vpow.pop %v578
    %v580 = vadd.f32 %v579, 1.0
    %v581 = vrcp.pop %v580
    %v582 = vmul.f32 1.0, %v581
    %v583 = vmul.f32 %v582, 2.0
    %v584 = vsub.f32 %v583, 1.0
    %v585 = vmul.f32 %v582, %v492
    %587 = vrot.lane.b32.xlu0 %v584, 64
    %v588 = vpop.permute.xlu0 %587
    %v590 = vmul.f32 %v582, %v588
    %592 = vrot.lane.b32.xlu0 %v590, 32
    %v593 = vpop.permute.xlu0 %592
    %v595 = vadd.f32 %v585, %v593
    %v596 = vtanh.pop %v595
    %598 = vrot.lane.b32.xlu0 %v596, 64
    %v599 = vpop.permute.xlu0 %598
    %v601 = vmul.f32 %v582, %v599
    %s602 = scalar_lea.vmem [#allocation2], 32
    %v603 = vld [vmem:[%s602] sm:$0xff]
    %605 = vrot.lane.b32.xlu0 %v601, 32
    %v606 = vpop.permute.xlu0 %605
    %v607 = vsel %vm193, %v606, 0
    %609 = vmatprep.subr.mxu0 0.0
    %610 = vmatpush1.msra.mxu0 %v188
    %611 = vmatprep.subr.mxu0 0.0
    %612 = vmatpush1.msra.mxu0 %v189
    %613 = vmatprep.subr.mxu0 0.0
    %614 = vmatpush1.msra.mxu0 %v190
    %615 = vmatprep.subr.mxu0 0.0
    %616 = vmatpush1.msra.mxu0 %v191
    %617 = vmatprep.subr.mxu0 0.0
    %618 = vmatpush1.msra.mxu0 0.0
    %619 = vmatprep.subr.mxu0 0.0
    %620 = vmatpush1.msra.mxu0 0.0
    %621 = vmatprep.subr.mxu0 0.0
    %622 = vmatpush1.msra.mxu0 0.0
    %623 = vmatprep.subr.mxu0 0.0
    %624 = vmatpush1.msra.mxu0 0.0
    %625 = vmatprep.subr.mxu0 0.0
    %626 = vmatpush1.msra.mxu0 0.0
    %627 = vmatprep.subr.mxu0 0.0
    %628 = vmatpush1.msra.mxu0 0.0
    %629 = vmatprep.subr.mxu0 0.0
    %630 = vmatpush1.msra.mxu0 0.0
    %631 = vmatprep.subr.mxu0 0.0
    %632 = vmatpush1.msra.mxu0 0.0
    %633 = vmatprep.subr.mxu0 0.0
    %634 = vmatpush1.msra.mxu0 0.0
    %635 = vmatprep.subr.mxu0 0.0
    %636 = vmatpush1.msra.mxu0 0.0
    %637 = vmatprep.subr.mxu0 0.0
    %638 = vmatpush1.msra.mxu0 0.0
    %639 = vmatprep.subr.mxu0 0.0
    %640 = vmatpush1.msra.mxu0 0.0
    %641 = vmatprep.subr.mxu0 0.0
    %642 = vmatpush1.msra.mxu0 0.0
    %643 = vmatprep.subr.mxu0 0.0
    %644 = vmatpush1.msra.mxu0 0.0
    %645 = vmatprep.subr.mxu0 0.0
    %646 = vmatpush1.msra.mxu0 0.0
    %647 = vmatprep.subr.mxu0 0.0
    %648 = vmatpush1.msra.mxu0 0.0
    %649 = vmatprep.subr.mxu0 0.0
    %650 = vmatpush1.msra.mxu0 0.0
    %651 = vmatprep.subr.mxu0 0.0
    %652 = vmatpush1.msra.mxu0 0.0
    %653 = vmatprep.subr.mxu0 0.0
    %654 = vmatpush1.msra.mxu0 0.0
    %655 = vmatprep.subr.mxu0 0.0
    %656 = vmatpush1.msra.mxu0 0.0
    %657 = vmatprep.subr.mxu0 0.0
    %658 = vmatpush1.msra.mxu0 0.0
    %659 = vmatprep.subr.mxu0 0.0
    %660 = vmatpush1.msra.mxu0 0.0
    %661 = vmatprep.subr.mxu0 0.0
    %662 = vmatpush1.msra.mxu0 0.0
    %663 = vmatprep.subr.mxu0 0.0
    %664 = vmatpush1.msra.mxu0 0.0
    %665 = vmatprep.subr.mxu0 0.0
    %666 = vmatpush1.msra.mxu0 0.0
    %667 = vmatprep.subr.mxu0 0.0
    %668 = vmatpush1.msra.mxu0 0.0
    %669 = vmatprep.subr.mxu0 0.0
    %670 = vmatpush1.msra.mxu0 0.0
    %671 = vmatprep.subr.mxu0 0.0
    %672 = vmatpush1.msra.mxu0 0.0
    %673 = vmatprep.mubr.f32.mxu0 0.0
    %674 = vmatmul.mubr.f32.gmra.mrb[0].mxu0 %v607
    %v675 = vpop.f32.mrb[0].mxu0
    %v676 = vadd.f32 0.0, %v675
    %v677 = vpop.f32.mrb[0].mxu0
    %678 = vdwg.mxu0
    %v679 = vadd.f32 %v603, %v676
    %v680 = vxor.u32 %v679, 2147483648
    %v681 = vmul.f32 %v680, 1.442695
    %v682 = vpow.pop %v681
    %v683 = vadd.f32 %v682, 1.0
    %v684 = vrcp.pop %v683
    %v685 = vmul.f32 1.0, %v684
    %v686 = vmul.f32 %v685, 2.0
    %v687 = vsub.f32 %v686, 1.0
    %v688 = vmul.f32 %v685, %v595
    %690 = vrot.lane.b32.xlu0 %v687, 64
    %v691 = vpop.permute.xlu0 %690
    %v693 = vmul.f32 %v685, %v691
    %695 = vrot.lane.b32.xlu0 %v693, 32
    %v696 = vpop.permute.xlu0 %695
    %v698 = vadd.f32 %v688, %v696
    %v699 = vtanh.pop %v698
    %701 = vrot.lane.b32.xlu0 %v699, 64
    %v702 = vpop.permute.xlu0 %701
    %v704 = vmul.f32 %v685, %v702
    %s705 = scalar_lea.vmem [#allocation2], 40
    %v706 = vld [vmem:[%s705] sm:$0xff]
    %708 = vrot.lane.b32.xlu0 %v704, 32
    %v709 = vpop.permute.xlu0 %708
    %v710 = vsel %vm193, %v709, 0
    %712 = vmatprep.subr.mxu0 0.0
    %713 = vmatpush1.msra.mxu0 %v188
    %714 = vmatprep.subr.mxu0 0.0
    %715 = vmatpush1.msra.mxu0 %v189
    %716 = vmatprep.subr.mxu0 0.0
    %717 = vmatpush1.msra.mxu0 %v190
    %718 = vmatprep.subr.mxu0 0.0
    %719 = vmatpush1.msra.mxu0 %v191
    %720 = vmatprep.subr.mxu0 0.0
    %721 = vmatpush1.msra.mxu0 0.0
    %722 = vmatprep.subr.mxu0 0.0
    %723 = vmatpush1.msra.mxu0 0.0
    %724 = vmatprep.subr.mxu0 0.0
    %725 = vmatpush1.msra.mxu0 0.0
    %726 = vmatprep.subr.mxu0 0.0
    %727 = vmatpush1.msra.mxu0 0.0
    %728 = vmatprep.subr.mxu0 0.0
    %729 = vmatpush1.msra.mxu0 0.0
    %730 = vmatprep.subr.mxu0 0.0
    %731 = vmatpush1.msra.mxu0 0.0
    %732 = vmatprep.subr.mxu0 0.0
    %733 = vmatpush1.msra.mxu0 0.0
    %734 = vmatprep.subr.mxu0 0.0
    %735 = vmatpush1.msra.mxu0 0.0
    %736 = vmatprep.subr.mxu0 0.0
    %737 = vmatpush1.msra.mxu0 0.0
    %738 = vmatprep.subr.mxu0 0.0
    %739 = vmatpush1.msra.mxu0 0.0
    %740 = vmatprep.subr.mxu0 0.0
    %741 = vmatpush1.msra.mxu0 0.0
    %742 = vmatprep.subr.mxu0 0.0
    %743 = vmatpush1.msra.mxu0 0.0
    %744 = vmatprep.subr.mxu0 0.0
    %745 = vmatpush1.msra.mxu0 0.0
    %746 = vmatprep.subr.mxu0 0.0
    %747 = vmatpush1.msra.mxu0 0.0
    %748 = vmatprep.subr.mxu0 0.0
    %749 = vmatpush1.msra.mxu0 0.0
    %750 = vmatprep.subr.mxu0 0.0
    %751 = vmatpush1.msra.mxu0 0.0
    %752 = vmatprep.subr.mxu0 0.0
    %753 = vmatpush1.msra.mxu0 0.0
    %754 = vmatprep.subr.mxu0 0.0
    %755 = vmatpush1.msra.mxu0 0.0
    %756 = vmatprep.subr.mxu0 0.0
    %757 = vmatpush1.msra.mxu0 0.0
    %758 = vmatprep.subr.mxu0 0.0
    %759 = vmatpush1.msra.mxu0 0.0
    %760 = vmatprep.subr.mxu0 0.0
    %761 = vmatpush1.msra.mxu0 0.0
    %762 = vmatprep.subr.mxu0 0.0
    %763 = vmatpush1.msra.mxu0 0.0
    %764 = vmatprep.subr.mxu0 0.0
    %765 = vmatpush1.msra.mxu0 0.0
    %766 = vmatprep.subr.mxu0 0.0
    %767 = vmatpush1.msra.mxu0 0.0
    %768 = vmatprep.subr.mxu0 0.0
    %769 = vmatpush1.msra.mxu0 0.0
    %770 = vmatprep.subr.mxu0 0.0
    %771 = vmatpush1.msra.mxu0 0.0
    %772 = vmatprep.subr.mxu0 0.0
    %773 = vmatpush1.msra.mxu0 0.0
    %774 = vmatprep.subr.mxu0 0.0
    %775 = vmatpush1.msra.mxu0 0.0
    %776 = vmatprep.mubr.f32.mxu0 0.0
    %777 = vmatmul.mubr.f32.gmra.mrb[0].mxu0 %v710
    %v778 = vpop.f32.mrb[0].mxu0
    %v779 = vadd.f32 0.0, %v778
    %v780 = vpop.f32.mrb[0].mxu0
    %781 = vdwg.mxu0
    %v782 = vadd.f32 %v706, %v779
    %v783 = vxor.u32 %v782, 2147483648
    %v784 = vmul.f32 %v783, 1.442695
    %v785 = vpow.pop %v784
    %v786 = vadd.f32 %v785, 1.0
    %v787 = vrcp.pop %v786
    %v788 = vmul.f32 1.0, %v787
    %v789 = vmul.f32 %v788, 2.0
    %v790 = vsub.f32 %v789, 1.0
    %v791 = vmul.f32 %v788, %v698
    %793 = vrot.lane.b32.xlu0 %v790, 64
    %v794 = vpop.permute.xlu0 %793
    %v796 = vmul.f32 %v788, %v794
    %798 = vrot.lane.b32.xlu0 %v796, 32
    %v799 = vpop.permute.xlu0 %798
    %v801 = vadd.f32 %v791, %v799
    %v802 = vtanh.pop %v801
    %804 = vrot.lane.b32.xlu0 %v802, 64
    %v805 = vpop.permute.xlu0 %804
    %v807 = vmul.f32 %v788, %v805
    %s808 = scalar_lea.vmem [#allocation2], 48
    %v809 = vld [vmem:[%s808] sm:$0xff]
    %811 = vrot.lane.b32.xlu0 %v807, 32
    %v812 = vpop.permute.xlu0 %811
    %v813 = vsel %vm193, %v812, 0
    %815 = vmatprep.subr.mxu0 0.0
    %816 = vmatpush1.msra.mxu0 %v188
    %817 = vmatprep.subr.mxu0 0.0
    %818 = vmatpush1.msra.mxu0 %v189
    %819 = vmatprep.subr.mxu0 0.0
    %820 = vmatpush1.msra.mxu0 %v190
    %821 = vmatprep.subr.mxu0 0.0
    %822 = vmatpush1.msra.mxu0 %v191
    %823 = vmatprep.subr.mxu0 0.0
    %824 = vmatpush1.msra.mxu0 0.0
    %825 = vmatprep.subr.mxu0 0.0
    %826 = vmatpush1.msra.mxu0 0.0
    %827 = vmatprep.subr.mxu0 0.0
    %828 = vmatpush1.msra.mxu0 0.0
    %829 = vmatprep.subr.mxu0 0.0
    %830 = vmatpush1.msra.mxu0 0.0
    %831 = vmatprep.subr.mxu0 0.0
    %832 = vmatpush1.msra.mxu0 0.0
    %833 = vmatprep.subr.mxu0 0.0
    %834 = vmatpush1.msra.mxu0 0.0
    %835 = vmatprep.subr.mxu0 0.0
    %836 = vmatpush1.msra.mxu0 0.0
    %837 = vmatprep.subr.mxu0 0.0
    %838 = vmatpush1.msra.mxu0 0.0
    %839 = vmatprep.subr.mxu0 0.0
    %840 = vmatpush1.msra.mxu0 0.0
    %841 = vmatprep.subr.mxu0 0.0
    %842 = vmatpush1.msra.mxu0 0.0
    %843 = vmatprep.subr.mxu0 0.0
    %844 = vmatpush1.msra.mxu0 0.0
    %845 = vmatprep.subr.mxu0 0.0
    %846 = vmatpush1.msra.mxu0 0.0
    %847 = vmatprep.subr.mxu0 0.0
    %848 = vmatpush1.msra.mxu0 0.0
    %849 = vmatprep.subr.mxu0 0.0
    %850 = vmatpush1.msra.mxu0 0.0
    %851 = vmatprep.subr.mxu0 0.0
    %852 = vmatpush1.msra.mxu0 0.0
    %853 = vmatprep.subr.mxu0 0.0
    %854 = vmatpush1.msra.mxu0 0.0
    %855 = vmatprep.subr.mxu0 0.0
    %856 = vmatpush1.msra.mxu0 0.0
    %857 = vmatprep.subr.mxu0 0.0
    %858 = vmatpush1.msra.mxu0 0.0
    %859 = vmatprep.subr.mxu0 0.0
    %860 = vmatpush1.msra.mxu0 0.0
    %861 = vmatprep.subr.mxu0 0.0
    %862 = vmatpush1.msra.mxu0 0.0
    %863 = vmatprep.subr.mxu0 0.0
    %864 = vmatpush1.msra.mxu0 0.0
    %865 = vmatprep.subr.mxu0 0.0
    %866 = vmatpush1.msra.mxu0 0.0
    %867 = vmatprep.subr.mxu0 0.0
    %868 = vmatpush1.msra.mxu0 0.0
    %869 = vmatprep.subr.mxu0 0.0
    %870 = vmatpush1.msra.mxu0 0.0
    %871 = vmatprep.subr.mxu0 0.0
    %872 = vmatpush1.msra.mxu0 0.0
    %873 = vmatprep.subr.mxu0 0.0
    %874 = vmatpush1.msra.mxu0 0.0
    %875 = vmatprep.subr.mxu0 0.0
    %876 = vmatpush1.msra.mxu0 0.0
    %877 = vmatprep.subr.mxu0 0.0
    %878 = vmatpush1.msra.mxu0 0.0
    %879 = vmatprep.mubr.f32.mxu0 0.0
    %880 = vmatmul.mubr.f32.gmra.mrb[0].mxu0 %v813
    %v881 = vpop.f32.mrb[0].mxu0
    %v882 = vadd.f32 0.0, %v881
    %v883 = vpop.f32.mrb[0].mxu0
    %884 = vdwg.mxu0
    %v885 = vadd.f32 %v809, %v882
    %v886 = vxor.u32 %v885, 2147483648
    %v887 = vmul.f32 %v886, 1.442695
    %v888 = vpow.pop %v887
    %v889 = vadd.f32 %v888, 1.0
    %v890 = vrcp.pop %v889
    %v891 = vmul.f32 1.0, %v890
    %v892 = vmul.f32 %v891, 2.0
    %v893 = vsub.f32 %v892, 1.0
    %v894 = vmul.f32 %v891, %v801
    %896 = vrot.lane.b32.xlu0 %v893, 64
    %v897 = vpop.permute.xlu0 %896
    %v899 = vmul.f32 %v891, %v897
    %901 = vrot.lane.b32.xlu0 %v899, 32
    %v902 = vpop.permute.xlu0 %901
    %v904 = vadd.f32 %v894, %v902
    %v905 = vtanh.pop %v904
    %907 = vrot.lane.b32.xlu0 %v905, 64
    %v908 = vpop.permute.xlu0 %907
    %v910 = vmul.f32 %v891, %v908
    %s911 = scalar_lea.vmem [#allocation2], 56
    %v912 = vld [vmem:[%s911] sm:$0xff]
    %914 = vrot.lane.b32.xlu0 %v910, 32
    %v915 = vpop.permute.xlu0 %914
    %v916 = vsel %vm193, %v915, 0
    %918 = vmatprep.subr.mxu0 0.0
    %919 = vmatpush1.msra.mxu0 %v188
    %920 = vmatprep.subr.mxu0 0.0
    %921 = vmatpush1.msra.mxu0 %v189
    %922 = vmatprep.subr.mxu0 0.0
    %923 = vmatpush1.msra.mxu0 %v190
    %924 = vmatprep.subr.mxu0 0.0
    %925 = vmatpush1.msra.mxu0 %v191
    %926 = vmatprep.subr.mxu0 0.0
    %927 = vmatpush1.msra.mxu0 0.0
    %928 = vmatprep.subr.mxu0 0.0
    %929 = vmatpush1.msra.mxu0 0.0
    %930 = vmatprep.subr.mxu0 0.0
    %931 = vmatpush1.msra.mxu0 0.0
    %932 = vmatprep.subr.mxu0 0.0
    %933 = vmatpush1.msra.mxu0 0.0
    %934 = vmatprep.subr.mxu0 0.0
    %935 = vmatpush1.msra.mxu0 0.0
    %936 = vmatprep.subr.mxu0 0.0
    %937 = vmatpush1.msra.mxu0 0.0
    %938 = vmatprep.subr.mxu0 0.0
    %939 = vmatpush1.msra.mxu0 0.0
    %940 = vmatprep.subr.mxu0 0.0
    %941 = vmatpush1.msra.mxu0 0.0
    %942 = vmatprep.subr.mxu0 0.0
    %943 = vmatpush1.msra.mxu0 0.0
    %944 = vmatprep.subr.mxu0 0.0
    %945 = vmatpush1.msra.mxu0 0.0
    %946 = vmatprep.subr.mxu0 0.0
    %947 = vmatpush1.msra.mxu0 0.0
    %948 = vmatprep.subr.mxu0 0.0
    %949 = vmatpush1.msra.mxu0 0.0
    %950 = vmatprep.subr.mxu0 0.0
    %951 = vmatpush1.msra.mxu0 0.0
    %952 = vmatprep.subr.mxu0 0.0
    %953 = vmatpush1.msra.mxu0 0.0
    %954 = vmatprep.subr.mxu0 0.0
    %955 = vmatpush1.msra.mxu0 0.0
    %956 = vmatprep.subr.mxu0 0.0
    %957 = vmatpush1.msra.mxu0 0.0
    %958 = vmatprep.subr.mxu0 0.0
    %959 = vmatpush1.msra.mxu0 0.0
    %960 = vmatprep.subr.mxu0 0.0
    %961 = vmatpush1.msra.mxu0 0.0
    %962 = vmatprep.subr.mxu0 0.0
    %963 = vmatpush1.msra.mxu0 0.0
    %964 = vmatprep.subr.mxu0 0.0
    %965 = vmatpush1.msra.mxu0 0.0
    %966 = vmatprep.subr.mxu0 0.0
    %967 = vmatpush1.msra.mxu0 0.0
    %968 = vmatprep.subr.mxu0 0.0
    %969 = vmatpush1.msra.mxu0 0.0
    %970 = vmatprep.subr.mxu0 0.0
    %971 = vmatpush1.msra.mxu0 0.0
    %972 = vmatprep.subr.mxu0 0.0
    %973 = vmatpush1.msra.mxu0 0.0
    %974 = vmatprep.subr.mxu0 0.0
    %975 = vmatpush1.msra.mxu0 0.0
    %976 = vmatprep.subr.mxu0 0.0
    %977 = vmatpush1.msra.mxu0 0.0
    %978 = vmatprep.subr.mxu0 0.0
    %979 = vmatpush1.msra.mxu0 0.0
    %980 = vmatprep.subr.mxu0 0.0
    %981 = vmatpush1.msra.mxu0 0.0
    %982 = vmatprep.mubr.f32.mxu0 0.0
    %983 = vmatmul.mubr.f32.gmra.mrb[0].mxu0 %v916
    %v984 = vpop.f32.mrb[0].mxu0
    %v985 = vadd.f32 0.0, %v984
    %v986 = vpop.f32.mrb[0].mxu0
    %987 = vdwg.mxu0
    %v988 = vadd.f32 %v912, %v985
    %v989 = vxor.u32 %v988, 2147483648
    %v990 = vmul.f32 %v989, 1.442695
    %v991 = vpow.pop %v990
    %v992 = vadd.f32 %v991, 1.0
    %v993 = vrcp.pop %v992
    %v994 = vmul.f32 1.0, %v993
    %v995 = vmul.f32 %v994, 2.0
    %v996 = vsub.f32 %v995, 1.0
    %v997 = vmul.f32 %v994, %v904
    %999 = vrot.lane.b32.xlu0 %v996, 64
    %v1000 = vpop.permute.xlu0 %999
    %v1002 = vmul.f32 %v994, %v1000
    %1004 = vrot.lane.b32.xlu0 %v1002, 32
    %v1005 = vpop.permute.xlu0 %1004
    %v1007 = vadd.f32 %v997, %v1005
    %v1008 = vtanh.pop %v1007
    %1010 = vrot.lane.b32.xlu0 %v1008, 64
    %v1011 = vpop.permute.xlu0 %1010
    %v1013 = vmul.f32 %v994, %v1011
    %v1014 = vld [vmem:[#allocation3] sm:$0xff]
    %v1015 = vld [vmem:[#allocation3 + $0x8] sm:$0xff]
    %v1016 = vld [vmem:[#allocation3 + $0x10] sm:$0xff]
    %v1017 = vld [vmem:[#allocation3 + $0x18] sm:$0xff]
    %v1018 = vld [vmem:[%s5] sm:$0x1]
    %v1020 = vlaneseq
    %v1021 = vshrl.u32 %v1020, 7
    %v1022 = vsub.s32 0, %v1021
    %v1023 = vrot.slane %v1018, %v1022
    %1026 = vrot.lane.b32.xlu0 %v1013, 32
    %v1027 = vpop.permute.xlu0 %1026
    %v1028 = vsel %vm193, %v1027, 0
    %1030 = vmatprep.subr.mxu0 0.0
    %1031 = vmatpush1.msra.mxu0 %v1014
    %1032 = vmatprep.subr.mxu0 0.0
    %1033 = vmatpush1.msra.mxu0 %v1015
    %1034 = vmatprep.subr.mxu0 0.0
    %1035 = vmatpush1.msra.mxu0 %v1016
    %1036 = vmatprep.subr.mxu0 0.0
    %1037 = vmatpush1.msra.mxu0 %v1017
    %1038 = vmatprep.subr.mxu0 0.0
    %1039 = vmatpush1.msra.mxu0 0.0
    %1040 = vmatprep.subr.mxu0 0.0
    %1041 = vmatpush1.msra.mxu0 0.0
    %1042 = vmatprep.subr.mxu0 0.0
    %1043 = vmatpush1.msra.mxu0 0.0
    %1044 = vmatprep.subr.mxu0 0.0
    %1045 = vmatpush1.msra.mxu0 0.0
    %1046 = vmatprep.subr.mxu0 0.0
    %1047 = vmatpush1.msra.mxu0 0.0
    %1048 = vmatprep.subr.mxu0 0.0
    %1049 = vmatpush1.msra.mxu0 0.0
    %1050 = vmatprep.subr.mxu0 0.0
    %1051 = vmatpush1.msra.mxu0 0.0
    %1052 = vmatprep.subr.mxu0 0.0
    %1053 = vmatpush1.msra.mxu0 0.0
    %1054 = vmatprep.subr.mxu0 0.0
    %1055 = vmatpush1.msra.mxu0 0.0
    %1056 = vmatprep.subr.mxu0 0.0
    %1057 = vmatpush1.msra.mxu0 0.0
    %1058 = vmatprep.subr.mxu0 0.0
    %1059 = vmatpush1.msra.mxu0 0.0
    %1060 = vmatprep.subr.mxu0 0.0
    %1061 = vmatpush1.msra.mxu0 0.0
    %1062 = vmatprep.subr.mxu0 0.0
    %1063 = vmatpush1.msra.mxu0 0.0
    %1064 = vmatprep.subr.mxu0 0.0
    %1065 = vmatpush1.msra.mxu0 0.0
    %1066 = vmatprep.subr.mxu0 0.0
    %1067 = vmatpush1.msra.mxu0 0.0
    %1068 = vmatprep.subr.mxu0 0.0
    %1069 = vmatpush1.msra.mxu0 0.0
    %1070 = vmatprep.subr.mxu0 0.0
    %1071 = vmatpush1.msra.mxu0 0.0
    %1072 = vmatprep.subr.mxu0 0.0
    %1073 = vmatpush1.msra.mxu0 0.0
    %1074 = vmatprep.subr.mxu0 0.0
    %1075 = vmatpush1.msra.mxu0 0.0
    %1076 = vmatprep.subr.mxu0 0.0
    %1077 = vmatpush1.msra.mxu0 0.0
    %1078 = vmatprep.subr.mxu0 0.0
    %1079 = vmatpush1.msra.mxu0 0.0
    %1080 = vmatprep.subr.mxu0 0.0
    %1081 = vmatpush1.msra.mxu0 0.0
    %1082 = vmatprep.subr.mxu0 0.0
    %1083 = vmatpush1.msra.mxu0 0.0
    %1084 = vmatprep.subr.mxu0 0.0
    %1085 = vmatpush1.msra.mxu0 0.0
    %1086 = vmatprep.subr.mxu0 0.0
    %1087 = vmatpush1.msra.mxu0 0.0
    %1088 = vmatprep.subr.mxu0 0.0
    %1089 = vmatpush1.msra.mxu0 0.0
    %1090 = vmatprep.subr.mxu0 0.0
    %1091 = vmatpush1.msra.mxu0 0.0
    %1092 = vmatprep.subr.mxu0 0.0
    %1093 = vmatpush1.msra.mxu0 0.0
    %1094 = vmatprep.mubr.f32.mxu0 0.0
    %1095 = vmatmul.mubr.f32.gmra.mrb[0].mxu0 %v1028
    %v1096 = vpop.f32.mrb[0].mxu0
    %v1097 = vadd.f32 %v1023, %v1096
    %v1098 = vpop.f32.mrb[0].mxu0
    %1099 = vdwg.mxu0
    %v1100 = vmax.f32 %v1097, 0.0
    %v1101 = vld [vmem:[#allocation6] sm:$0xff]
    %v1102 = vld [vmem:[#allocation6 + $0x8] sm:$0xff]
    %v1103 = vld [vmem:[#allocation6 + $0x10] sm:$0xff]
    %v1104 = vld [vmem:[#allocation6 + $0x18] sm:$0xff]
    %v1105 = vld [vmem:[#allocation6 + $0x20] sm:$0xff]
    %v1106 = vld [vmem:[#allocation6 + $0x28] sm:$0xff]
    %v1107 = vld [vmem:[#allocation6 + $0x30] sm:$0xff]
    %v1108 = vld [vmem:[#allocation6 + $0x38] sm:$0xff]
    %v1109 = vld [vmem:[#allocation6 + $0x40] sm:$0xff]
    %v1110 = vld [vmem:[#allocation6 + $0x48] sm:$0xff]
    %v1111 = vld [vmem:[#allocation6 + $0x50] sm:$0xff]
    %v1112 = vld [vmem:[#allocation6 + $0x58] sm:$0xff]
    %v1113 = vld [vmem:[#allocation6 + $0x60] sm:$0xff]
    %v1114 = vld [vmem:[#allocation6 + $0x68] sm:$0xff]
    %v1115 = vld [vmem:[#allocation6 + $0x70] sm:$0xff]
    %v1116 = vld [vmem:[#allocation6 + $0x78] sm:$0xff]
    %v1117 = vld [vmem:[%s7] sm:$0x1]
    %v1119 = vlaneseq
    %v1120 = vshrl.u32 %v1119, 7
    %v1121 = vsub.s32 0, %v1120
    %v1122 = vrot.slane %v1117, %v1121
    %1124 = vmatprep.subr.mxu0 0.0
    %1125 = vmatpush1.msra.mxu0 %v1101
    %1126 = vmatprep.subr.mxu0 0.0
    %1127 = vmatpush1.msra.mxu0 %v1102
    %1128 = vmatprep.subr.mxu0 0.0
    %1129 = vmatpush1.msra.mxu0 %v1103
    %1130 = vmatprep.subr.mxu0 0.0
    %1131 = vmatpush1.msra.mxu0 %v1104
    %1132 = vmatprep.subr.mxu0 0.0
    %1133 = vmatpush1.msra.mxu0 %v1105
    %1134 = vmatprep.subr.mxu0 0.0
    %1135 = vmatpush1.msra.mxu0 %v1106
    %1136 = vmatprep.subr.mxu0 0.0
    %1137 = vmatpush1.msra.mxu0 %v1107
    %1138 = vmatprep.subr.mxu0 0.0
    %1139 = vmatpush1.msra.mxu0 %v1108
    %1140 = vmatprep.subr.mxu0 0.0
    %1141 = vmatpush1.msra.mxu0 %v1109
    %1142 = vmatprep.subr.mxu0 0.0
    %1143 = vmatpush1.msra.mxu0 %v1110
    %1144 = vmatprep.subr.mxu0 0.0
    %1145 = vmatpush1.msra.mxu0 %v1111
    %1146 = vmatprep.subr.mxu0 0.0
    %1147 = vmatpush1.msra.mxu0 %v1112
    %1148 = vmatprep.subr.mxu0 0.0
    %1149 = vmatpush1.msra.mxu0 %v1113
    %1150 = vmatprep.subr.mxu0 0.0
    %1151 = vmatpush1.msra.mxu0 %v1114
    %1152 = vmatprep.subr.mxu0 0.0
    %1153 = vmatpush1.msra.mxu0 %v1115
    %1154 = vmatprep.subr.mxu0 0.0
    %1155 = vmatpush1.msra.mxu0 %v1116
    %1156 = vmatprep.subr.mxu0 0.0
    %1157 = vmatpush1.msra.mxu0 0.0
    %1158 = vmatprep.subr.mxu0 0.0
    %1159 = vmatpush1.msra.mxu0 0.0
    %1160 = vmatprep.subr.mxu0 0.0
    %1161 = vmatpush1.msra.mxu0 0.0
    %1162 = vmatprep.subr.mxu0 0.0
    %1163 = vmatpush1.msra.mxu0 0.0
    %1164 = vmatprep.subr.mxu0 0.0
    %1165 = vmatpush1.msra.mxu0 0.0
    %1166 = vmatprep.subr.mxu0 0.0
    %1167 = vmatpush1.msra.mxu0 0.0
    %1168 = vmatprep.subr.mxu0 0.0
    %1169 = vmatpush1.msra.mxu0 0.0
    %1170 = vmatprep.subr.mxu0 0.0
    %1171 = vmatpush1.msra.mxu0 0.0
    %1172 = vmatprep.subr.mxu0 0.0
    %1173 = vmatpush1.msra.mxu0 0.0
    %1174 = vmatprep.subr.mxu0 0.0
    %1175 = vmatpush1.msra.mxu0 0.0
    %1176 = vmatprep.subr.mxu0 0.0
    %1177 = vmatpush1.msra.mxu0 0.0
    %1178 = vmatprep.subr.mxu0 0.0
    %1179 = vmatpush1.msra.mxu0 0.0
    %1180 = vmatprep.subr.mxu0 0.0
    %1181 = vmatpush1.msra.mxu0 0.0
    %1182 = vmatprep.subr.mxu0 0.0
    %1183 = vmatpush1.msra.mxu0 0.0
    %1184 = vmatprep.subr.mxu0 0.0
    %1185 = vmatpush1.msra.mxu0 0.0
    %1186 = vmatprep.subr.mxu0 0.0
    %1187 = vmatpush1.msra.mxu0 0.0
    %1188 = vmatprep.mubr.f32.mxu0 0.0
    %1189 = vmatmul.mubr.f32.gmra.mrb[0].mxu0 %v1100
    %v1190 = vpop.f32.mrb[0].mxu0
    %v1191 = vadd.f32 %v1122, %v1190
    %v1192 = vpop.f32.mrb[0].mxu0
    %1193 = vdwg.mxu0
    %1194 = vst [vmem:[#allocation8] sm:$0xff] %v1191
    // Predicated region
    $region42: #{tpu_custom_call.1} parent=1 // pred_check
      _
    $region43: #{tpu_custom_call.1} parent=1 // pred_check_branch
      %1196 = sbr.rel (0) target = $region45
    $region44: #{tpu_custom_call.1} parent=1 // pred_region
      %s1198 = ssub.s32 128, 128
      %1199 = vsyncadd [#allocation5], %s1198
      %s1201 = sshll.u32 [#allocation8], 4
      %s1202 = int_to_ptr.vmem [resolvable:$true] %s1201
      %1204 = dma.vmem_to_hbm [thread:$0]  %s1202, 128, %s8, [#allocation5]
    $region45: #{tpu_custom_call.1} parent=1 // pred_fallthru
      _
    // Predicated region
    $region46: #{tpu_custom_call.1} parent=1 // pred_check
      _
    $region47: #{tpu_custom_call.1} parent=1 // pred_check_branch
      %1206 = sbr.rel (0) target = $region49
    $region48: #{tpu_custom_call.1} parent=1 // pred_region
      %1207 = dma.done [#allocation5], 128
    $region49: #{tpu_custom_call.1} parent=1 // pred_fallthru
      _
    %1208 = vsyncpa [#allocation4], 1
    %1209 = vsyncpa [#allocation7], 1
    %1210 = vsyncpa [#allocation5], 1

</llo_original>
